<compile_context>
chip_gen: v6e
topology: v6e:2x2x1
jax: 0.10.0
libtpu: 0.0.40
codegen_flags: <defaults>
</compile_context>

<pallas_src>
import math

import jax
import jax.numpy as jnp
import numpy as np
from jax.experimental import pallas as pl
from jax.experimental.pallas import tpu as pltpu

# ---------------------------------------------------------------------------
# model hyper-parameters (consistent with the module's __init__)
# ---------------------------------------------------------------------------
D_MODEL = 32
NUM_HEADS = 4
D_HEAD = 8
HD = NUM_HEADS * D_HEAD          # num_heads * d_head = 32

LENGTHS = [5, 7]                 # static per-graph node counts
BATCH = len(LENGTHS)
MAX_LEN = max(LENGTHS)
L = MAX_LEN + 1                  # +1 for the cls token row
N = BATCH * L                    # flattened (batch*seq) rows

WCOL = max(3 * D_HEAD, D_MODEL)  # lane width of the fused weight slab
WROWS = D_MODEL + D_HEAD         # sublane extent of the fused weight slab

INV_SQRT_DH = 1.0 / math.sqrt(D_HEAD)
NEG_BIG = -1e10


# ---------------------------------------------------------------------------
# Pallas kernel: one invocation processes the whole (tiny) batch
# ---------------------------------------------------------------------------
def _build_kernel(cls_rows):
    cls_rows = tuple(int(c) for c in cls_rows)   # static cls-token row per sample

    def kernel(xmb_ref, w_ref, out_ref, alpha_ref):
        # ---- fused per-call input: [x | mask_keep | mask_bias] -------------
        xmb = xmb_ref[...]                                  # (N, D_MODEL + 2N)
        x = xmb[:, 0:D_MODEL]                               # (N, D_MODEL)
        keep = xmb[:, D_MODEL:D_MODEL + N]                  # (N, N)  1.0 / 0.0
        bias = xmb[:, D_MODEL + N:D_MODEL + 2 * N]          # (N, N)  0 / -1e10 / -2e10

        # ---- fused weight slab: per-head [Wq|Wk|Wv|pad ; Wo] ---------------
        w = w_ref[...]                                      # (H, WROWS, WCOL)
        w_qkv = w[:, 0:D_MODEL, :]                          # (H, D_MODEL, WCOL)
        w_out = w[:, D_MODEL:D_MODEL + D_HEAD, 0:D_MODEL]   # (H, D_HEAD, D_MODEL)

        # ---- batched per-head QKV projection (1/sqrt(d_head) folded in Wq) -
        x_rep = jnp.broadcast_to(x[None, :, :], (NUM_HEADS, N, D_MODEL))
        qkv = jnp.einsum('hnd,hde->hne', x_rep, w_qkv,
                         preferred_element_type=jnp.float32)    # (H, N, WCOL)
        q = qkv[:, :, 0:D_HEAD]
        k = qkv[:, :, D_HEAD:2 * D_HEAD]
        v = qkv[:, :, 2 * D_HEAD:3 * D_HEAD]

        # ---- scores for all heads & all samples at once ---------------------
        e = jnp.einsum('hxd,hyd->hxy', q, k,
                       preferred_element_type=jnp.float32)      # (H, N, N)
        # exact masked_fill: e*1 + 0 (kept), e*0 + (-1e10) (in-sample masked),
        # e*0 + (-2e10) (cross-sample) -> cross terms vanish in the softmax.
        e = e * keep[None, :, :] + bias[None, :, :]

        # ---- single numerically-stable softmax over the stacked scores ------
        m = jnp.max(e, axis=-1, keepdims=True)
        p = jnp.exp(e - m)
        s = jnp.sum(p, axis=-1, keepdims=True)
        r = pl.reciprocal(s, approx=True)                   # EUP vrcp
        r = r * (2.0 - s * r)                               # one NR step -> fp32 accuracy
        alpha = p * r                                       # (H, N, N)

        # ---- alpha output in module layout (B, H, L, L): one store ----------
        blocks = [alpha[:, b * L:(b + 1) * L, b * L:(b + 1) * L]
                  for b in range(BATCH)]                    # per-sample diagonal blocks
        alpha_ref[...] = jnp.stack(blocks, axis=0).astype(alpha_ref.dtype)

        # ---- attention-weighted values + output projection (2 batched dots) -
        o = jnp.einsum('hxy,hyd->hxd', alpha, v,
                       preferred_element_type=jnp.float32)      # (H, N, D_HEAD)
        proj = jnp.einsum('hnd,hdm->hnm', o, w_out,
                          preferred_element_type=jnp.float32)   # (H, N, D_MODEL)
        full = proj[0]
        for h in range(1, NUM_HEADS):                        # unrolled head sum (cheap, safe)
            full = full + proj[h]                            # (N, D_MODEL)

        # cls-row readout: one tiny row store per sample (rows are static).
        for b in range(BATCH):
            row = b * L + cls_rows[b]
            out_ref[b:b + 1, :] = full[row:row + 1, :].astype(out_ref.dtype)

    return kernel


def mha_block(xmb, w_slab, cls_rows):
    """xmb: (N, D_MODEL+2N) fused [x|keep|bias]; w_slab: (H, WROWS, WCOL)
    -> out_cls (B, D_MODEL), alpha (B, NUM_HEADS, L, L)."""
    kernel = _build_kernel(cls_rows)
    out_shape = (
        jax.ShapeDtypeStruct((BATCH, D_MODEL), jnp.float32),
        jax.ShapeDtypeStruct((BATCH, NUM_HEADS, L, L), jnp.float32),
    )
    return pl.pallas_call(
        kernel,
        out_shape=out_shape,
        grid=(1,),                                   # whole working set (<30 KB) in VMEM
        in_specs=[
            pl.BlockSpec((N, D_MODEL + 2 * N), lambda i: (0, 0)),          # fused x|keep|bias
            pl.BlockSpec((NUM_HEADS, WROWS, WCOL), lambda i: (0, 0, 0)),   # fused weight slab
        ],
        out_specs=(
            pl.BlockSpec((BATCH, D_MODEL), lambda i: (0, 0)),              # cls readout
            pl.BlockSpec((BATCH, NUM_HEADS, L, L), lambda i: (0, 0, 0, 0)),  # alpha
        ),
        compiler_params=pltpu.CompilerParams(dimension_semantics=("arbitrary",)),
    )(xmb, w_slab)


# ---------------------------------------------------------------------------
# plain-JAX glue: padding, cls-token insertion, mask build, weight prep
# ---------------------------------------------------------------------------
def transform_feat(x_packed, lengths, cls_token):
    """pad_packed_tensor(x, lengths, 0, l_min=max_len+1) + cls token at row lengths[i]."""
    padded = jnp.zeros((BATCH, L, D_MODEL), dtype=x_packed.dtype)
    off = 0
    for i, ln in enumerate(lengths):
        padded = padded.at[i, :ln, :].set(x_packed[off:off + ln])
        padded = padded.at[i, ln, :].set(cls_token[0])
        off += ln
    return padded


def build_mask(lengths):
    mask = np.zeros((BATCH, L, L), np.float32)
    for i, ln in enumerate(lengths):
        mask[i, :ln + 1, :ln + 1] = 1.0
    return jnp.asarray(mask)


def build_keep_bias(lengths):
    """Multiplicative keep + additive bias for the stacked (N, N) score layout.
    keep=1/bias=0 for valid in-sample pairs; keep=0/bias=-1e10 for in-sample masked;
    keep=0/bias=-2e10 for cross-sample pairs (so padded rows softmax to exactly 1/L)."""
    keep = np.zeros((N, N), np.float32)
    bias = np.full((N, N), 2.0 * NEG_BIG, np.float32)
    for b, ln in enumerate(lengths):
        lo = b * L
        bias[lo:lo + L, lo:lo + L] = NEG_BIG
        keep[lo:lo + ln + 1, lo:lo + ln + 1] = 1.0
        bias[lo:lo + ln + 1, lo:lo + ln + 1] = 0.0
    return jnp.asarray(keep), jnp.asarray(bias)


def build_weight_slab(params):
    """One (H, D_MODEL + D_HEAD, WCOL) slab: rows [0:D_MODEL] = [Wq_h|Wk_h|Wv_h|pad],
    rows [D_MODEL:] = Wo_h.  1/sqrt(d_head) folded into the Wq columns."""
    wq_t = params["wq"].T * INV_SQRT_DH                    # (D_MODEL, HD)
    wk_t = params["wk"].T
    wv_t = params["wv"].T
    wo_t = params["wo"].T                                   # (HD, D_MODEL)
    qkv_heads = []
    for h in range(NUM_HEADS):
        sl = slice(h * D_HEAD, (h + 1) * D_HEAD)
        blk = jnp.concatenate(
            [wq_t[:, sl], wk_t[:, sl], wv_t[:, sl],
             jnp.zeros((D_MODEL, WCOL - 3 * D_HEAD), jnp.float32)], axis=1)   # (D_MODEL, WCOL)
        qkv_heads.append(blk)
    w_qkv_heads = jnp.stack(qkv_heads, axis=0)              # (H, D_MODEL, WCOL)
    wo_heads = wo_t.reshape(NUM_HEADS, D_HEAD, D_MODEL)     # (H, D_HEAD, D_MODEL)
    if WCOL > D_MODEL:
        wo_heads = jnp.pad(wo_heads, ((0, 0), (0, 0), (0, WCOL - D_MODEL)))
    return jnp.concatenate([w_qkv_heads, wo_heads], axis=1)  # (H, WROWS, WCOL)


def multihead_attention_readout(x_packed, lengths, params):
    x_padded = transform_feat(x_packed, lengths, params["class_emb"])
    x_flat = x_padded.reshape(N, D_MODEL)
    keep, bias = build_keep_bias(lengths)
    xmb = jnp.concatenate([x_flat, keep, bias], axis=1)      # ONE per-call input DMA
    w_slab = build_weight_slab(params)                       # ONE weight DMA
    x_cls, alpha = mha_block(xmb, w_slab, lengths)
    return x_cls, alpha


# ---------------------------------------------------------------------------
# pure-JAX reference (mirrors the PyTorch forward exactly; nn.Linear has bias=False)
# ---------------------------------------------------------------------------
def reference(x_packed, lengths, params):
    x_padded = transform_feat(x_packed, lengths, params["class_emb"])
    mask = build_mask(lengths)
    q = (x_padded @ params["wq"].T).reshape(BATCH, L, NUM_HEADS, D_HEAD)
    k = (x_padded @ params["wk"].T).reshape(BATCH, L, NUM_HEADS, D_HEAD)
    v = (x_padded @ params["wv"].T).reshape(BATCH, L, NUM_HEADS, D_HEAD)
    e = jnp.einsum('bxhd,byhd->bhxy', q, k) / np.sqrt(D_HEAD)
    e = jnp.where(mask[:, None] == 0.0, -1e10, e)
    alpha = jax.nn.softmax(e, axis=-1)
    out = jnp.einsum('bhxy,byhd->bxhd', alpha, v).reshape(BATCH, L, HD)
    out = out @ params["wo"].T
    len_arr = jnp.asarray(lengths, dtype=jnp.int32)
    return out[jnp.arange(BATCH), len_arr], alpha


# ---------------------------------------------------------------------------
if __name__ == "__main__":
    key = jax.random.PRNGKey(0)
    k_x, k_q, k_k, k_v, k_o, k_e = jax.random.split(key, 6)

    n_total = sum(LENGTHS)
    x_packed = jax.random.normal(k_x, (n_total, D_MODEL), dtype=jnp.float32)

    params = {
        "wq": jax.random.normal(k_q, (HD, D_MODEL), dtype=jnp.float32) * 0.1,
        "wk": jax.random.normal(k_k, (HD, D_MODEL), dtype=jnp.float32) * 0.1,
        "wv": jax.random.normal(k_v, (HD, D_MODEL), dtype=jnp.float32) * 0.1,
        "wo": jax.random.normal(k_o, (D_MODEL, HD), dtype=jnp.float32) * 0.1,
        "class_emb": jax.random.normal(k_e, (1, D_MODEL), dtype=jnp.float32),
    }

    x_out, alpha = multihead_attention_readout(x_packed, LENGTHS, params)
    x_out = jax.block_until_ready(x_out)
    alpha = jax.block_until_ready(alpha)

    x_ref, alpha_ref = reference(x_packed, LENGTHS, params)
    np.testing.assert_allclose(np.asarray(x_out), np.asarray(x_ref), rtol=1e-4, atol=1e-5)
    np.testing.assert_allclose(np.asarray(alpha), np.asarray(alpha_ref), rtol=1e-4, atol=1e-5)

    assert x_out.shape == (BATCH, D_MODEL)
    assert alpha.shape == (BATCH, NUM_HEADS, L, L)
    print("KERNEL_OK")
</pallas_src>

<mosaic_0001>
module attributes {stable_mosaic.version = 11 : i64} {
  func.func @kernel(%arg0: i32, %arg1: memref<16x64xf32, #tpu.memory_space<vmem>>, %arg2: memref<4x40x32xf32, #tpu.memory_space<vmem>>, %arg3: memref<2x32xf32, #tpu.memory_space<vmem>>, %arg4: memref<2x4x8x8xf32, #tpu.memory_space<vmem>>) attributes {dimension_semantics = [#tpu.dimension_semantics<arbitrary>], iteration_bounds = array<i64: 1>, scalar_prefetch = 0 : i64, scratch_operands = 0 : i64, tpu.core_type = #tpu.core_type<tc>, window_params = [{pipeline_mode = #tpu.pipeline_mode<synchronous>, transform_indices = @transform_0, window_bounds = array<i64: 16, 64>}, {pipeline_mode = #tpu.pipeline_mode<synchronous>, transform_indices = @transform_1, window_bounds = array<i64: 4, 40, 32>}, {pipeline_mode = #tpu.pipeline_mode<synchronous>, transform_indices = @transform_2, window_bounds = array<i64: 2, 32>}, {pipeline_mode = #tpu.pipeline_mode<synchronous>, transform_indices = @transform_3, window_bounds = array<i64: 2, 4, 8, 8>}]} {
    %c0 = arith.constant 0 : index
    %c0_0 = arith.constant 0 : index
    %0 = vector.load %arg1[%c0, %c0_0] : memref<16x64xf32, #tpu.memory_space<vmem>>, vector<16x64xf32>
    %1 = vector.extract_strided_slice %0 {offsets = [0, 0], sizes = [16, 32], strides = [1, 1]} : vector<16x64xf32> to vector<16x32xf32>
    %2 = vector.extract_strided_slice %0 {offsets = [0, 32], sizes = [16, 16], strides = [1, 1]} : vector<16x64xf32> to vector<16x16xf32>
    %3 = vector.extract_strided_slice %0 {offsets = [0, 48], sizes = [16, 16], strides = [1, 1]} : vector<16x64xf32> to vector<16x16xf32>
    %c0_1 = arith.constant 0 : index
    %c0_2 = arith.constant 0 : index
    %c0_3 = arith.constant 0 : index
    %4 = vector.load %arg2[%c0_1, %c0_2, %c0_3] : memref<4x40x32xf32, #tpu.memory_space<vmem>>, vector<4x40x32xf32>
    %5 = vector.extract_strided_slice %4 {offsets = [0, 0, 0], sizes = [4, 32, 32], strides = [1, 1, 1]} : vector<4x40x32xf32> to vector<4x32x32xf32>
    %6 = vector.extract_strided_slice %4 {offsets = [0, 32, 0], sizes = [4, 8, 32], strides = [1, 1, 1]} : vector<4x40x32xf32> to vector<4x8x32xf32>
    %7 = vector.shape_cast %1 : vector<16x32xf32> to vector<1x16x32xf32>
    %8 = vector.shape_cast %7 : vector<1x16x32xf32> to vector<1x16x32xf32>
    %9 = vector.broadcast %8 : vector<1x16x32xf32> to vector<4x16x32xf32>
    "tpu.trace_start"() <{level = 10 : i32, message = "hnd,hde->hne"}> : () -> ()
    %cst = arith.constant dense<0.000000e+00> : vector<4x16x32xf32>
    %10 = tpu.matmul %9, %5, %cst {dimension_numbers = #tpu.dot_dimension_numbers<[2], [1], [1], [2], [0, 0, 0, 1, 1, 2], [0], [0]>} : vector<4x16x32xf32>, vector<4x32x32xf32>, vector<4x16x32xf32> -> vector<4x16x32xf32>
    "tpu.trace_stop"() : () -> ()
    %11 = vector.extract_strided_slice %10 {offsets = [0, 0, 0], sizes = [4, 16, 8], strides = [1, 1, 1]} : vector<4x16x32xf32> to vector<4x16x8xf32>
    %12 = vector.extract_strided_slice %10 {offsets = [0, 0, 8], sizes = [4, 16, 8], strides = [1, 1, 1]} : vector<4x16x32xf32> to vector<4x16x8xf32>
    %13 = vector.extract_strided_slice %10 {offsets = [0, 0, 16], sizes = [4, 16, 8], strides = [1, 1, 1]} : vector<4x16x32xf32> to vector<4x16x8xf32>
    "tpu.trace_start"() <{level = 10 : i32, message = "hxd,hyd->hxy"}> : () -> ()
    %cst_4 = arith.constant dense<0.000000e+00> : vector<4x16x16xf32>
    %14 = tpu.matmul %11, %12, %cst_4 {dimension_numbers = #tpu.dot_dimension_numbers<[2], [2], [1], [1], [0, 0, 0, 1, 1, 1], [0], [0]>} : vector<4x16x8xf32>, vector<4x16x8xf32>, vector<4x16x16xf32> -> vector<4x16x16xf32>
    "tpu.trace_stop"() : () -> ()
    %15 = vector.shape_cast %2 : vector<16x16xf32> to vector<1x16x16xf32>
    %16 = vector.broadcast %15 : vector<1x16x16xf32> to vector<4x16x16xf32>
    %17 = arith.mulf %14, %16 : vector<4x16x16xf32>
    %18 = vector.shape_cast %3 : vector<16x16xf32> to vector<1x16x16xf32>
    %19 = vector.broadcast %18 : vector<1x16x16xf32> to vector<4x16x16xf32>
    %20 = arith.addf %17, %19 : vector<4x16x16xf32>
    %cst_5 = arith.constant dense<0xFF800000> : vector<4x16xf32>
    %21 = vector.multi_reduction <maximumf>, %20, %cst_5 [2] : vector<4x16x16xf32> to vector<4x16xf32>
    %22 = vector.shape_cast %21 : vector<4x16xf32> to vector<4x16x1xf32>
    %23 = vector.broadcast %22 : vector<4x16x1xf32> to vector<4x16x16xf32>
    %24 = arith.subf %20, %23 : vector<4x16x16xf32>
    %25 = math.exp %24 : vector<4x16x16xf32>
    %cst_6 = arith.constant dense<0.000000e+00> : vector<4x16xf32>
    %26 = vector.multi_reduction <add>, %25, %cst_6 [2] : vector<4x16x16xf32> to vector<4x16xf32>
    %27 = vector.shape_cast %26 : vector<4x16xf32> to vector<4x16x1xf32>
    %28 = tpu.reciprocal %27 {approx = true} : vector<4x16x1xf32> -> vector<4x16x1xf32>
    %29 = arith.mulf %27, %28 : vector<4x16x1xf32>
    %cst_7 = arith.constant 2.000000e+00 : f32
    %30 = vector.broadcast %cst_7 : f32 to vector<4x16x1xf32>
    %31 = arith.subf %30, %29 : vector<4x16x1xf32>
    %32 = arith.mulf %28, %31 : vector<4x16x1xf32>
    %33 = vector.broadcast %32 : vector<4x16x1xf32> to vector<4x16x16xf32>
    %34 = arith.mulf %25, %33 : vector<4x16x16xf32>
    %35 = vector.extract_strided_slice %34 {offsets = [0, 0, 0], sizes = [4, 8, 8], strides = [1, 1, 1]} : vector<4x16x16xf32> to vector<4x8x8xf32>
    %36 = vector.extract_strided_slice %34 {offsets = [0, 8, 8], sizes = [4, 8, 8], strides = [1, 1, 1]} : vector<4x16x16xf32> to vector<4x8x8xf32>
    %37 = vector.shape_cast %35 : vector<4x8x8xf32> to vector<1x4x8x8xf32>
    %38 = vector.shape_cast %36 : vector<4x8x8xf32> to vector<1x4x8x8xf32>
    %39 = tpu.concatenate %37, %38 in 0 : vector<1x4x8x8xf32>, vector<1x4x8x8xf32> -> vector<2x4x8x8xf32>
    %c0_8 = arith.constant 0 : index
    %c0_9 = arith.constant 0 : index
    %c0_10 = arith.constant 0 : index
    %c0_11 = arith.constant 0 : index
    %40 = vector.load %arg4[%c0_8, %c0_9, %c0_10, %c0_11] : memref<2x4x8x8xf32, #tpu.memory_space<vmem>>, vector<2x4x8x8xf32>
    tpu.vector_store %arg4[%c0_8, %c0_9, %c0_10, %c0_11], %39 {strides = array<i32>} : memref<2x4x8x8xf32, #tpu.memory_space<vmem>>, vector<2x4x8x8xf32>,
    "tpu.trace_start"() <{level = 10 : i32, message = "hxy,hyd->hxd"}> : () -> ()
    %cst_12 = arith.constant dense<0.000000e+00> : vector<4x16x8xf32>
    %41 = tpu.matmul %34, %13, %cst_12 {dimension_numbers = #tpu.dot_dimension_numbers<[2], [1], [1], [2], [0, 0, 0, 1, 1, 2], [0], [0]>} : vector<4x16x16xf32>, vector<4x16x8xf32>, vector<4x16x8xf32> -> vector<4x16x8xf32>
    "tpu.trace_stop"() : () -> ()
    "tpu.trace_start"() <{level = 10 : i32, message = "hnd,hdm->hnm"}> : () -> ()
    %cst_13 = arith.constant dense<0.000000e+00> : vector<4x16x32xf32>
    %42 = tpu.matmul %41, %6, %cst_13 {dimension_numbers = #tpu.dot_dimension_numbers<[2], [1], [1], [2], [0, 0, 0, 1, 1, 2], [0], [0]>} : vector<4x16x8xf32>, vector<4x8x32xf32>, vector<4x16x32xf32> -> vector<4x16x32xf32>
    "tpu.trace_stop"() : () -> ()
    %43 = vector.extract_strided_slice %42 {offsets = [0, 0, 0], sizes = [1, 16, 32], strides = [1, 1, 1]} : vector<4x16x32xf32> to vector<1x16x32xf32>
    %44 = vector.shape_cast %43 : vector<1x16x32xf32> to vector<16x32xf32>
    %45 = vector.extract_strided_slice %42 {offsets = [1, 0, 0], sizes = [1, 16, 32], strides = [1, 1, 1]} : vector<4x16x32xf32> to vector<1x16x32xf32>
    %46 = vector.shape_cast %45 : vector<1x16x32xf32> to vector<16x32xf32>
    %47 = arith.addf %44, %46 : vector<16x32xf32>
    %48 = vector.extract_strided_slice %42 {offsets = [2, 0, 0], sizes = [1, 16, 32], strides = [1, 1, 1]} : vector<4x16x32xf32> to vector<1x16x32xf32>
    %49 = vector.shape_cast %48 : vector<1x16x32xf32> to vector<16x32xf32>
    %50 = arith.addf %47, %49 : vector<16x32xf32>
    %51 = vector.extract_strided_slice %42 {offsets = [3, 0, 0], sizes = [1, 16, 32], strides = [1, 1, 1]} : vector<4x16x32xf32> to vector<1x16x32xf32>
    %52 = vector.shape_cast %51 : vector<1x16x32xf32> to vector<16x32xf32>
    %53 = arith.addf %50, %52 : vector<16x32xf32>
    %54 = vector.extract_strided_slice %53 {offsets = [5, 0], sizes = [1, 32], strides = [1, 1]} : vector<16x32xf32> to vector<1x32xf32>
    %c0_14 = arith.constant 0 : index
    %c0_15 = arith.constant 0 : index
    %55 = vector.load %arg3[%c0_14, %c0_15] : memref<2x32xf32, #tpu.memory_space<vmem>>, vector<1x32xf32>
    tpu.vector_store %arg3[%c0_14, %c0_15], %54 {strides = array<i32>} : memref<2x32xf32, #tpu.memory_space<vmem>>, vector<1x32xf32>,
    %56 = vector.extract_strided_slice %53 {offsets = [15, 0], sizes = [1, 32], strides = [1, 1]} : vector<16x32xf32> to vector<1x32xf32>
    %c1 = arith.constant 1 : index
    %c0_16 = arith.constant 0 : index
    %57 = vector.load %arg3[%c1, %c0_16] : memref<2x32xf32, #tpu.memory_space<vmem>>, vector<1x32xf32>
    tpu.vector_store %arg3[%c1, %c0_16], %56 {strides = array<i32>} : memref<2x32xf32, #tpu.memory_space<vmem>>, vector<1x32xf32>,
    return
  }
  func.func @transform_0(%arg0: i32) -> (i32, i32) {
    %c0_i32 = arith.constant 0 : i32
    %c0_i32_0 = arith.constant 0 : i32
    %c0_i32_1 = arith.constant 0 : i32
    return %c0_i32, %c0_i32_0 : i32, i32
  }
  func.func @transform_1(%arg0: i32) -> (i32, i32, i32) {
    %c0_i32 = arith.constant 0 : i32
    %c0_i32_0 = arith.constant 0 : i32
    %c0_i32_1 = arith.constant 0 : i32
    %c0_i32_2 = arith.constant 0 : i32
    return %c0_i32, %c0_i32_0, %c0_i32_1 : i32, i32, i32
  }
  func.func @transform_2(%arg0: i32) -> (i32, i32) {
    %c0_i32 = arith.constant 0 : i32
    %c0_i32_0 = arith.constant 0 : i32
    %c0_i32_1 = arith.constant 0 : i32
    return %c0_i32, %c0_i32_0 : i32, i32
  }
  func.func @transform_3(%arg0: i32) -> (i32, i32, i32, i32) {
    %c0_i32 = arith.constant 0 : i32
    %c0_i32_0 = arith.constant 0 : i32
    %c0_i32_1 = arith.constant 0 : i32
    %c0_i32_2 = arith.constant 0 : i32
    %c0_i32_3 = arith.constant 0 : i32
    return %c0_i32, %c0_i32_0, %c0_i32_1, %c0_i32_2 : i32, i32, i32, i32
  }
}

</mosaic_0001>

<llo_original>
// kernel: tpu_custom_call.1
$region0: #{tpu_custom_call.1}
  #allocation0 [shape = 'u32[]', space=smem, size = 0x4, offset = 0x4, fixed_abs, tag = 'smem constant byte address 0x4 - core index']
  #allocation1 [shape = 'u32[144,128]{1,0:T(1,128)}', space=vmem, size = 0x12000, scoped, tag = 'internal scratch']
  %s0 = inlined_call_operand.vmem [shape: f32[16,64], index: 0, kind: input, shape index: {}]
  %s1 = inlined_call_operand.vmem [shape: f32[4,40,32], index: 1, kind: input, shape index: {}]
  %s2 = inlined_call_operand.hbm [shape: f32[2,32], index: 2, kind: output, shape index: {0}]
  %s3 = inlined_call_operand.hbm [shape: f32[2,4,8,8], index: 3, kind: output, shape index: {1}]
  %4 = xla_tuple %s2, %s3
  %s5 = sld [smem:[#allocation0]]
  $region26: #{tpu_custom_call.1} parent=0
    _
  %s7 = ssub.s32 1, %s5
  %s8 = scalar_select 0, %s7, %s5
  $region1: #{tpu_custom_call.1} parent=0
    #allocation2 [shape = 'u8[1024]{0}', space=vmem, size = 0x400, scoped, tag = 'output window, operand 0, single buffered']
    #allocation3 [shape = 's32[1]{0}', space=sflag, size = 0x4, scoped, tag = 'scoped memory for tpu_custom_call.1']
    #allocation4 [shape = 'u8[32768]{0}', space=vmem, size = 0x8000, scoped, tag = 'output window, operand 1, single buffered']
    #allocation5 [shape = 's32[1]{0}', space=sflag, size = 0x4, scoped, tag = 'scoped memory for tpu_custom_call.1']
    %9 = vsyncpa [#allocation3], 0
    %10 = vsyncpa [#allocation5], 0
    // Predicated region
    $region2: #{tpu_custom_call.1} parent=1 // pred_check
      _
    $region3: #{tpu_custom_call.1} parent=1 // pred_check_branch
      %12 = sbr.rel (0) target = $region5
    $region4: #{tpu_custom_call.1} parent=1 // pred_region
      _
    $region5: #{tpu_custom_call.1} parent=1 // pred_fallthru
      _
    // Predicated region
    $region6: #{tpu_custom_call.1} parent=1 // pred_check
      _
    $region7: #{tpu_custom_call.1} parent=1 // pred_check_branch
      %14 = sbr.rel (0) target = $region9
    $region8: #{tpu_custom_call.1} parent=1 // pred_region
      _
    $region9: #{tpu_custom_call.1} parent=1 // pred_fallthru
      _
    %v15 = vld [vmem:[%s0] sm:$0xff]
    %v16 = vld [vmem:[%s0 + $0x8] sm:$0xff]
    %v17 = vld [vmem:[%s1] sm:$0xff]
    %v18 = vld [vmem:[%s1 + $0x8] sm:$0xff]
    %v19 = vld [vmem:[%s1 + $0x10] sm:$0xff]
    %v20 = vld [vmem:[%s1 + $0x18] sm:$0xff]
    %v21 = vld [vmem:[%s1 + $0x20] sm:$0xff]
    %v22 = vld [vmem:[%s1 + $0x28] sm:$0xff]
    %v23 = vld [vmem:[%s1 + $0x30] sm:$0xff]
    %v24 = vld [vmem:[%s1 + $0x38] sm:$0xff]
    %v25 = vld [vmem:[%s1 + $0x40] sm:$0xff]
    %v26 = vld [vmem:[%s1 + $0x48] sm:$0xff]
    %v27 = vld [vmem:[%s1 + $0x50] sm:$0xff]
    %v28 = vld [vmem:[%s1 + $0x58] sm:$0xff]
    %v29 = vld [vmem:[%s1 + $0x60] sm:$0xff]
    %v30 = vld [vmem:[%s1 + $0x68] sm:$0xff]
    %v31 = vld [vmem:[%s1 + $0x70] sm:$0xff]
    %v32 = vld [vmem:[%s1 + $0x78] sm:$0xff]
    %v33 = vld [vmem:[%s1 + $0x80] sm:$0xff]
    %v34 = vld [vmem:[%s1 + $0x88] sm:$0xff]
    %v35 = vld [vmem:[%s1 + $0x90] sm:$0xff]
    %v36 = vld [vmem:[%s1 + $0x98] sm:$0xff]
    %vm37 = vcmask 261120
    %v39 = vsel %vm37, %v15, 0
    %v42 = vsel %vm37, %v16, 0
    %44 = vmatprep.subr.mxu0 0.0
    %45 = vmatpush1.msra.mxu0 0.0
    %46 = vmatprep.subr.mxu0 0.0
    %47 = vmatpush1.msra.mxu0 0.0
    %48 = vmatprep.subr.mxu0 0.0
    %49 = vmatpush1.msra.mxu0 0.0
    %50 = vmatprep.subr.mxu0 0.0
    %51 = vmatpush1.msra.mxu0 0.0
    %52 = vmatprep.subr.mxu0 0.0
    %53 = vmatpush1.msra.mxu0 0.0
    %54 = vmatprep.subr.mxu0 0.0
    %55 = vmatpush1.msra.mxu0 0.0
    %56 = vmatprep.subr.mxu0 0.0
    %57 = vmatpush1.msra.mxu0 0.0
    %58 = vmatprep.subr.mxu0 0.0
    %59 = vmatpush1.msra.mxu0 0.0
    %60 = vmatprep.subr.mxu0 0.0
    %61 = vmatpush1.msra.mxu0 0.0
    %62 = vmatprep.subr.mxu0 0.0
    %63 = vmatpush1.msra.mxu0 0.0
    %64 = vmatprep.subr.mxu0 0.0
    %65 = vmatpush1.msra.mxu0 0.0
    %66 = vmatprep.subr.mxu0 0.0
    %67 = vmatpush1.msra.mxu0 0.0
    %68 = vmatprep.subr.mxu0 0.0
    %69 = vmatpush1.msra.mxu0 %v20
    %70 = vmatprep.subr.mxu0 0.0
    %71 = vmatpush1.msra.mxu0 %v19
    %72 = vmatprep.subr.mxu0 0.0
    %73 = vmatpush1.msra.mxu0 %v18
    %74 = vmatprep.subr.mxu0 0.0
    %75 = vmatpush1.msra.mxu0 %v17
    %76 = vmatprep.subr.mxu0 0.0
    %77 = vmatpush2.msra.mxu0 0.0
    %78 = vmatprep.subr.mxu0 0.0
    %79 = vmatpush2.msra.mxu0 0.0
    %80 = vmatprep.subr.mxu0 0.0
    %81 = vmatpush2.msra.mxu0 0.0
    %82 = vmatprep.subr.mxu0 0.0
    %83 = vmatpush2.msra.mxu0 0.0
    %84 = vmatprep.subr.mxu0 0.0
    %85 = vmatpush2.msra.mxu0 0.0
    %86 = vmatprep.subr.mxu0 0.0
    %87 = vmatpush2.msra.mxu0 0.0
    %88 = vmatprep.subr.mxu0 0.0
    %89 = vmatpush2.msra.mxu0 0.0
    %90 = vmatprep.subr.mxu0 0.0
    %91 = vmatpush2.msra.mxu0 0.0
    %92 = vmatprep.subr.mxu0 0.0
    %93 = vmatpush2.msra.mxu0 0.0
    %94 = vmatprep.subr.mxu0 0.0
    %95 = vmatpush2.msra.mxu0 0.0
    %96 = vmatprep.subr.mxu0 0.0
    %97 = vmatpush2.msra.mxu0 0.0
    %98 = vmatprep.subr.mxu0 0.0
    %99 = vmatpush2.msra.mxu0 0.0
    %100 = vmatprep.subr.mxu0 0.0
    %101 = vmatpush2.msra.mxu0 0.0
    %102 = vmatprep.subr.mxu0 0.0
    %103 = vmatpush2.msra.mxu0 0.0
    %104 = vmatprep.subr.mxu0 0.0
    %105 = vmatpush2.msra.mxu0 0.0
    %106 = vmatprep.subr.mxu0 0.0
    %107 = vmatpush2.msra.mxu0 0.0
    %108 = vmatprep.mubr.f32.mxu0 0.0
    %109 = vmatmul.mubr.f32.gmra.mxu0 %v39
    %v110 = vpop.f32.mrf.mxu0
    %v111 = vadd.f32 0.0, %v110
    %v112 = vpop.f32.mrf.mxu0
    %113 = vmatprep.mubr.f32.mxu0 0.0
    %114 = vmatmul.mubr.f32.gmra.mxu0 %v42
    %v115 = vpop.f32.mrf.mxu0
    %v116 = vadd.f32 0.0, %v115
    %v117 = vpop.f32.mrf.mxu0
    %118 = vdwg.mxu0
    %119 = vmatprep.subr.mxu0 0.0
    %120 = vmatpush1.msra.mxu0 0.0
    %121 = vmatprep.subr.mxu0 0.0
    %122 = vmatpush1.msra.mxu0 0.0
    %123 = vmatprep.subr.mxu0 0.0
    %124 = vmatpush1.msra.mxu0 0.0
    %125 = vmatprep.subr.mxu0 0.0
    %126 = vmatpush1.msra.mxu0 0.0
    %127 = vmatprep.subr.mxu0 0.0
    %128 = vmatpush1.msra.mxu0 0.0
    %129 = vmatprep.subr.mxu0 0.0
    %130 = vmatpush1.msra.mxu0 0.0
    %131 = vmatprep.subr.mxu0 0.0
    %132 = vmatpush1.msra.mxu0 0.0
    %133 = vmatprep.subr.mxu0 0.0
    %134 = vmatpush1.msra.mxu0 0.0
    %135 = vmatprep.subr.mxu0 0.0
    %136 = vmatpush1.msra.mxu0 0.0
    %137 = vmatprep.subr.mxu0 0.0
    %138 = vmatpush1.msra.mxu0 0.0
    %139 = vmatprep.subr.mxu0 0.0
    %140 = vmatpush1.msra.mxu0 0.0
    %141 = vmatprep.subr.mxu0 0.0
    %142 = vmatpush1.msra.mxu0 0.0
    %143 = vmatprep.subr.mxu0 0.0
    %144 = vmatpush1.msra.mxu0 %v25
    %145 = vmatprep.subr.mxu0 0.0
    %146 = vmatpush1.msra.mxu0 %v24
    %147 = vmatprep.subr.mxu0 0.0
    %148 = vmatpush1.msra.mxu0 %v23
    %149 = vmatprep.subr.mxu0 0.0
    %150 = vmatpush1.msra.mxu0 %v22
    %151 = vmatprep.subr.mxu0 0.0
    %152 = vmatpush2.msra.mxu0 0.0
    %153 = vmatprep.subr.mxu0 0.0
    %154 = vmatpush2.msra.mxu0 0.0
    %155 = vmatprep.subr.mxu0 0.0
    %156 = vmatpush2.msra.mxu0 0.0
    %157 = vmatprep.subr.mxu0 0.0
    %158 = vmatpush2.msra.mxu0 0.0
    %159 = vmatprep.subr.mxu0 0.0
    %160 = vmatpush2.msra.mxu0 0.0
    %161 = vmatprep.subr.mxu0 0.0
    %162 = vmatpush2.msra.mxu0 0.0
    %163 = vmatprep.subr.mxu0 0.0
    %164 = vmatpush2.msra.mxu0 0.0
    %165 = vmatprep.subr.mxu0 0.0
    %166 = vmatpush2.msra.mxu0 0.0
    %167 = vmatprep.subr.mxu0 0.0
    %168 = vmatpush2.msra.mxu0 0.0
    %169 = vmatprep.subr.mxu0 0.0
    %170 = vmatpush2.msra.mxu0 0.0
    %171 = vmatprep.subr.mxu0 0.0
    %172 = vmatpush2.msra.mxu0 0.0
    %173 = vmatprep.subr.mxu0 0.0
    %174 = vmatpush2.msra.mxu0 0.0
    %175 = vmatprep.subr.mxu0 0.0
    %176 = vmatpush2.msra.mxu0 0.0
    %177 = vmatprep.subr.mxu0 0.0
    %178 = vmatpush2.msra.mxu0 0.0
    %179 = vmatprep.subr.mxu0 0.0
    %180 = vmatpush2.msra.mxu0 0.0
    %181 = vmatprep.subr.mxu0 0.0
    %182 = vmatpush2.msra.mxu0 0.0
    %183 = vmatprep.mubr.f32.mxu0 0.0
    %184 = vmatmul.mubr.f32.gmra.mxu0 %v39
    %v185 = vpop.f32.mrf.mxu0
    %v186 = vadd.f32 0.0, %v185
    %v187 = vpop.f32.mrf.mxu0
    %188 = vmatprep.mubr.f32.mxu0 0.0
    %189 = vmatmul.mubr.f32.gmra.mxu0 %v42
    %v190 = vpop.f32.mrf.mxu0
    %v191 = vadd.f32 0.0, %v190
    %v192 = vpop.f32.mrf.mxu0
    %193 = vdwg.mxu0
    %194 = vmatprep.subr.mxu0 0.0
    %195 = vmatpush1.msra.mxu0 0.0
    %196 = vmatprep.subr.mxu0 0.0
    %197 = vmatpush1.msra.mxu0 0.0
    %198 = vmatprep.subr.mxu0 0.0
    %199 = vmatpush1.msra.mxu0 0.0
    %200 = vmatprep.subr.mxu0 0.0
    %201 = vmatpush1.msra.mxu0 0.0
    %202 = vmatprep.subr.mxu0 0.0
    %203 = vmatpush1.msra.mxu0 0.0
    %204 = vmatprep.subr.mxu0 0.0
    %205 = vmatpush1.msra.mxu0 0.0
    %206 = vmatprep.subr.mxu0 0.0
    %207 = vmatpush1.msra.mxu0 0.0
    %208 = vmatprep.subr.mxu0 0.0
    %209 = vmatpush1.msra.mxu0 0.0
    %210 = vmatprep.subr.mxu0 0.0
    %211 = vmatpush1.msra.mxu0 0.0
    %212 = vmatprep.subr.mxu0 0.0
    %213 = vmatpush1.msra.mxu0 0.0
    %214 = vmatprep.subr.mxu0 0.0
    %215 = vmatpush1.msra.mxu0 0.0
    %216 = vmatprep.subr.mxu0 0.0
    %217 = vmatpush1.msra.mxu0 0.0
    %218 = vmatprep.subr.mxu0 0.0
    %219 = vmatpush1.msra.mxu0 %v30
    %220 = vmatprep.subr.mxu0 0.0
    %221 = vmatpush1.msra.mxu0 %v29
    %222 = vmatprep.subr.mxu0 0.0
    %223 = vmatpush1.msra.mxu0 %v28
    %224 = vmatprep.subr.mxu0 0.0
    %225 = vmatpush1.msra.mxu0 %v27
    %226 = vmatprep.subr.mxu0 0.0
    %227 = vmatpush2.msra.mxu0 0.0
    %228 = vmatprep.subr.mxu0 0.0
    %229 = vmatpush2.msra.mxu0 0.0
    %230 = vmatprep.subr.mxu0 0.0
    %231 = vmatpush2.msra.mxu0 0.0
    %232 = vmatprep.subr.mxu0 0.0
    %233 = vmatpush2.msra.mxu0 0.0
    %234 = vmatprep.subr.mxu0 0.0
    %235 = vmatpush2.msra.mxu0 0.0
    %236 = vmatprep.subr.mxu0 0.0
    %237 = vmatpush2.msra.mxu0 0.0
    %238 = vmatprep.subr.mxu0 0.0
    %239 = vmatpush2.msra.mxu0 0.0
    %240 = vmatprep.subr.mxu0 0.0
    %241 = vmatpush2.msra.mxu0 0.0
    %242 = vmatprep.subr.mxu0 0.0
    %243 = vmatpush2.msra.mxu0 0.0
    %244 = vmatprep.subr.mxu0 0.0
    %245 = vmatpush2.msra.mxu0 0.0
    %246 = vmatprep.subr.mxu0 0.0
    %247 = vmatpush2.msra.mxu0 0.0
    %248 = vmatprep.subr.mxu0 0.0
    %249 = vmatpush2.msra.mxu0 0.0
    %250 = vmatprep.subr.mxu0 0.0
    %251 = vmatpush2.msra.mxu0 0.0
    %252 = vmatprep.subr.mxu0 0.0
    %253 = vmatpush2.msra.mxu0 0.0
    %254 = vmatprep.subr.mxu0 0.0
    %255 = vmatpush2.msra.mxu0 0.0
    %256 = vmatprep.subr.mxu0 0.0
    %257 = vmatpush2.msra.mxu0 0.0
    %258 = vmatprep.mubr.f32.mxu0 0.0
    %259 = vmatmul.mubr.f32.gmra.mxu0 %v39
    %v260 = vpop.f32.mrf.mxu0
    %v261 = vadd.f32 0.0, %v260
    %v262 = vpop.f32.mrf.mxu0
    %263 = vmatprep.mubr.f32.mxu0 0.0
    %264 = vmatmul.mubr.f32.gmra.mxu0 %v42
    %v265 = vpop.f32.mrf.mxu0
    %v266 = vadd.f32 0.0, %v265
    %v267 = vpop.f32.mrf.mxu0
    %268 = vdwg.mxu0
    %269 = vmatprep.subr.mxu0 0.0
    %270 = vmatpush1.msra.mxu0 0.0
    %271 = vmatprep.subr.mxu0 0.0
    %272 = vmatpush1.msra.mxu0 0.0
    %273 = vmatprep.subr.mxu0 0.0
    %274 = vmatpush1.msra.mxu0 0.0
    %275 = vmatprep.subr.mxu0 0.0
    %276 = vmatpush1.msra.mxu0 0.0
    %277 = vmatprep.subr.mxu0 0.0
    %278 = vmatpush1.msra.mxu0 0.0
    %279 = vmatprep.subr.mxu0 0.0
    %280 = vmatpush1.msra.mxu0 0.0
    %281 = vmatprep.subr.mxu0 0.0
    %282 = vmatpush1.msra.mxu0 0.0
    %283 = vmatprep.subr.mxu0 0.0
    %284 = vmatpush1.msra.mxu0 0.0
    %285 = vmatprep.subr.mxu0 0.0
    %286 = vmatpush1.msra.mxu0 0.0
    %287 = vmatprep.subr.mxu0 0.0
    %288 = vmatpush1.msra.mxu0 0.0
    %289 = vmatprep.subr.mxu0 0.0
    %290 = vmatpush1.msra.mxu0 0.0
    %291 = vmatprep.subr.mxu0 0.0
    %292 = vmatpush1.msra.mxu0 0.0
    %293 = vmatprep.subr.mxu0 0.0
    %294 = vmatpush1.msra.mxu0 %v35
    %295 = vmatprep.subr.mxu0 0.0
    %296 = vmatpush1.msra.mxu0 %v34
    %297 = vmatprep.subr.mxu0 0.0
    %298 = vmatpush1.msra.mxu0 %v33
    %299 = vmatprep.subr.mxu0 0.0
    %300 = vmatpush1.msra.mxu0 %v32
    %301 = vmatprep.subr.mxu0 0.0
    %302 = vmatpush2.msra.mxu0 0.0
    %303 = vmatprep.subr.mxu0 0.0
    %304 = vmatpush2.msra.mxu0 0.0
    %305 = vmatprep.subr.mxu0 0.0
    %306 = vmatpush2.msra.mxu0 0.0
    %307 = vmatprep.subr.mxu0 0.0
    %308 = vmatpush2.msra.mxu0 0.0
    %309 = vmatprep.subr.mxu0 0.0
    %310 = vmatpush2.msra.mxu0 0.0
    %311 = vmatprep.subr.mxu0 0.0
    %312 = vmatpush2.msra.mxu0 0.0
    %313 = vmatprep.subr.mxu0 0.0
    %314 = vmatpush2.msra.mxu0 0.0
    %315 = vmatprep.subr.mxu0 0.0
    %316 = vmatpush2.msra.mxu0 0.0
    %317 = vmatprep.subr.mxu0 0.0
    %318 = vmatpush2.msra.mxu0 0.0
    %319 = vmatprep.subr.mxu0 0.0
    %320 = vmatpush2.msra.mxu0 0.0
    %321 = vmatprep.subr.mxu0 0.0
    %322 = vmatpush2.msra.mxu0 0.0
    %323 = vmatprep.subr.mxu0 0.0
    %324 = vmatpush2.msra.mxu0 0.0
    %325 = vmatprep.subr.mxu0 0.0
    %326 = vmatpush2.msra.mxu0 0.0
    %327 = vmatprep.subr.mxu0 0.0
    %328 = vmatpush2.msra.mxu0 0.0
    %329 = vmatprep.subr.mxu0 0.0
    %330 = vmatpush2.msra.mxu0 0.0
    %331 = vmatprep.subr.mxu0 0.0
    %332 = vmatpush2.msra.mxu0 0.0
    %333 = vmatprep.mubr.f32.mxu0 0.0
    %334 = vmatmul.mubr.f32.gmra.mxu0 %v39
    %v335 = vpop.f32.mrf.mxu0
    %v336 = vadd.f32 0.0, %v335
    %v337 = vpop.f32.mrf.mxu0
    %338 = vmatprep.mubr.f32.mxu0 0.0
    %339 = vmatmul.mubr.f32.gmra.mxu0 %v42
    %v340 = vpop.f32.mrf.mxu0
    %v341 = vadd.f32 0.0, %v340
    %v342 = vpop.f32.mrf.mxu0
    %343 = vdwg.mxu0
    %346 = vrot.lane.b32.xlu0 %v111, 120
    %v347 = vpop.permute.xlu0 %346
    %348 = vrot.lane.b32.xlu0 %v116, 120
    %v349 = vpop.permute.xlu0 %348
    %vm350 = vcmask 64512
    %v351 = vsel %vm350, %v111, 0
    %v353 = vsel %vm350, %v116, 0
    %v355 = vsel %vm350, %v347, 0
    %v357 = vsel %vm350, %v349, 0
    %359 = vmatprep.subr.mxu0 0.0
    %360 = vmatpush1.xpose.msra.mxu0 0.0
    %361 = vmatprep.subr.mxu0 0.0
    %362 = vmatpush1.xpose.msra.mxu0 0.0
    %363 = vmatprep.subr.mxu0 0.0
    %364 = vmatpush1.xpose.msra.mxu0 0.0
    %365 = vmatprep.subr.mxu0 0.0
    %366 = vmatpush1.xpose.msra.mxu0 0.0
    %367 = vmatprep.subr.mxu0 0.0
    %368 = vmatpush1.xpose.msra.mxu0 0.0
    %369 = vmatprep.subr.mxu0 0.0
    %370 = vmatpush1.xpose.msra.mxu0 0.0
    %371 = vmatprep.subr.mxu0 0.0
    %372 = vmatpush1.xpose.msra.mxu0 0.0
    %373 = vmatprep.subr.mxu0 0.0
    %374 = vmatpush1.xpose.msra.mxu0 0.0
    %375 = vmatprep.subr.mxu0 0.0
    %376 = vmatpush1.xpose.msra.mxu0 0.0
    %377 = vmatprep.subr.mxu0 0.0
    %378 = vmatpush1.xpose.msra.mxu0 0.0
    %379 = vmatprep.subr.mxu0 0.0
    %380 = vmatpush1.xpose.msra.mxu0 0.0
    %381 = vmatprep.subr.mxu0 0.0
    %382 = vmatpush1.xpose.msra.mxu0 0.0
    %383 = vmatprep.subr.mxu0 0.0
    %384 = vmatpush1.xpose.msra.mxu0 0.0
    %385 = vmatprep.subr.mxu0 0.0
    %386 = vmatpush1.xpose.msra.mxu0 0.0
    %387 = vmatprep.subr.mxu0 0.0
    %388 = vmatpush1.xpose.msra.mxu0 %v357
    %389 = vmatprep.subr.mxu0 0.0
    %390 = vmatpush1.xpose.msra.mxu0 %v355
    %391 = vmatprep.subr.mxu0 0.0
    %392 = vmatpush2.xpose.msra.mxu0 0.0
    %393 = vmatprep.subr.mxu0 0.0
    %394 = vmatpush2.xpose.msra.mxu0 0.0
    %395 = vmatprep.subr.mxu0 0.0
    %396 = vmatpush2.xpose.msra.mxu0 0.0
    %397 = vmatprep.subr.mxu0 0.0
    %398 = vmatpush2.xpose.msra.mxu0 0.0
    %399 = vmatprep.subr.mxu0 0.0
    %400 = vmatpush2.xpose.msra.mxu0 0.0
    %401 = vmatprep.subr.mxu0 0.0
    %402 = vmatpush2.xpose.msra.mxu0 0.0
    %403 = vmatprep.subr.mxu0 0.0
    %404 = vmatpush2.xpose.msra.mxu0 0.0
    %405 = vmatprep.subr.mxu0 0.0
    %406 = vmatpush2.xpose.msra.mxu0 0.0
    %407 = vmatprep.subr.mxu0 0.0
    %408 = vmatpush2.xpose.msra.mxu0 0.0
    %409 = vmatprep.subr.mxu0 0.0
    %410 = vmatpush2.xpose.msra.mxu0 0.0
    %411 = vmatprep.subr.mxu0 0.0
    %412 = vmatpush2.xpose.msra.mxu0 0.0
    %413 = vmatprep.subr.mxu0 0.0
    %414 = vmatpush2.xpose.msra.mxu0 0.0
    %415 = vmatprep.subr.mxu0 0.0
    %416 = vmatpush2.xpose.msra.mxu0 0.0
    %417 = vmatprep.subr.mxu0 0.0
    %418 = vmatpush2.xpose.msra.mxu0 0.0
    %419 = vmatprep.subr.mxu0 0.0
    %420 = vmatpush2.xpose.msra.mxu0 0.0
    %421 = vmatprep.subr.mxu0 0.0
    %422 = vmatpush2.xpose.msra.mxu0 0.0
    %423 = vmatprep.mubr.f32.mxu0 0.0
    %424 = vmatmul.mubr.f32.gmra.mxu0 %v351
    %v425 = vpop.f32.mrf.mxu0
    %v426 = vadd.f32 0.0, %v425
    %v427 = vpop.f32.mrf.mxu0
    %428 = vmatprep.mubr.f32.mxu0 0.0
    %429 = vmatmul.mubr.f32.gmra.mxu0 %v353
    %v430 = vpop.f32.mrf.mxu0
    %v431 = vadd.f32 0.0, %v430
    %v432 = vpop.f32.mrf.mxu0
    %433 = vdwg.mxu0
    %436 = vrot.lane.b32.xlu0 %v186, 120
    %v437 = vpop.permute.xlu0 %436
    %438 = vrot.lane.b32.xlu0 %v191, 120
    %v439 = vpop.permute.xlu0 %438
    %v440 = vsel %vm350, %v186, 0
    %v442 = vsel %vm350, %v191, 0
    %v444 = vsel %vm350, %v437, 0
    %v446 = vsel %vm350, %v439, 0
    %448 = vmatprep.subr.mxu0 0.0
    %449 = vmatpush1.xpose.msra.mxu0 0.0
    %450 = vmatprep.subr.mxu0 0.0
    %451 = vmatpush1.xpose.msra.mxu0 0.0
    %452 = vmatprep.subr.mxu0 0.0
    %453 = vmatpush1.xpose.msra.mxu0 0.0
    %454 = vmatprep.subr.mxu0 0.0
    %455 = vmatpush1.xpose.msra.mxu0 0.0
    %456 = vmatprep.subr.mxu0 0.0
    %457 = vmatpush1.xpose.msra.mxu0 0.0
    %458 = vmatprep.subr.mxu0 0.0
    %459 = vmatpush1.xpose.msra.mxu0 0.0
    %460 = vmatprep.subr.mxu0 0.0
    %461 = vmatpush1.xpose.msra.mxu0 0.0
    %462 = vmatprep.subr.mxu0 0.0
    %463 = vmatpush1.xpose.msra.mxu0 0.0
    %464 = vmatprep.subr.mxu0 0.0
    %465 = vmatpush1.xpose.msra.mxu0 0.0
    %466 = vmatprep.subr.mxu0 0.0
    %467 = vmatpush1.xpose.msra.mxu0 0.0
    %468 = vmatprep.subr.mxu0 0.0
    %469 = vmatpush1.xpose.msra.mxu0 0.0
    %470 = vmatprep.subr.mxu0 0.0
    %471 = vmatpush1.xpose.msra.mxu0 0.0
    %472 = vmatprep.subr.mxu0 0.0
    %473 = vmatpush1.xpose.msra.mxu0 0.0
    %474 = vmatprep.subr.mxu0 0.0
    %475 = vmatpush1.xpose.msra.mxu0 0.0
    %476 = vmatprep.subr.mxu0 0.0
    %477 = vmatpush1.xpose.msra.mxu0 %v446
    %478 = vmatprep.subr.mxu0 0.0
    %479 = vmatpush1.xpose.msra.mxu0 %v444
    %480 = vmatprep.subr.mxu0 0.0
    %481 = vmatpush2.xpose.msra.mxu0 0.0
    %482 = vmatprep.subr.mxu0 0.0
    %483 = vmatpush2.xpose.msra.mxu0 0.0
    %484 = vmatprep.subr.mxu0 0.0
    %485 = vmatpush2.xpose.msra.mxu0 0.0
    %486 = vmatprep.subr.mxu0 0.0
    %487 = vmatpush2.xpose.msra.mxu0 0.0
    %488 = vmatprep.subr.mxu0 0.0
    %489 = vmatpush2.xpose.msra.mxu0 0.0
    %490 = vmatprep.subr.mxu0 0.0
    %491 = vmatpush2.xpose.msra.mxu0 0.0
    %492 = vmatprep.subr.mxu0 0.0
    %493 = vmatpush2.xpose.msra.mxu0 0.0
    %494 = vmatprep.subr.mxu0 0.0
    %495 = vmatpush2.xpose.msra.mxu0 0.0
    %496 = vmatprep.subr.mxu0 0.0
    %497 = vmatpush2.xpose.msra.mxu0 0.0
    %498 = vmatprep.subr.mxu0 0.0
    %499 = vmatpush2.xpose.msra.mxu0 0.0
    %500 = vmatprep.subr.mxu0 0.0
    %501 = vmatpush2.xpose.msra.mxu0 0.0
    %502 = vmatprep.subr.mxu0 0.0
    %503 = vmatpush2.xpose.msra.mxu0 0.0
    %504 = vmatprep.subr.mxu0 0.0
    %505 = vmatpush2.xpose.msra.mxu0 0.0
    %506 = vmatprep.subr.mxu0 0.0
    %507 = vmatpush2.xpose.msra.mxu0 0.0
    %508 = vmatprep.subr.mxu0 0.0
    %509 = vmatpush2.xpose.msra.mxu0 0.0
    %510 = vmatprep.subr.mxu0 0.0
    %511 = vmatpush2.xpose.msra.mxu0 0.0
    %512 = vmatprep.mubr.f32.mxu0 0.0
    %513 = vmatmul.mubr.f32.gmra.mxu0 %v440
    %v514 = vpop.f32.mrf.mxu0
    %v515 = vadd.f32 0.0, %v514
    %v516 = vpop.f32.mrf.mxu0
    %517 = vmatprep.mubr.f32.mxu0 0.0
    %518 = vmatmul.mubr.f32.gmra.mxu0 %v442
    %v519 = vpop.f32.mrf.mxu0
    %v520 = vadd.f32 0.0, %v519
    %v521 = vpop.f32.mrf.mxu0
    %522 = vdwg.mxu0
    %525 = vrot.lane.b32.xlu0 %v261, 120
    %v526 = vpop.permute.xlu0 %525
    %527 = vrot.lane.b32.xlu0 %v266, 120
    %v528 = vpop.permute.xlu0 %527
    %v529 = vsel %vm350, %v261, 0
    %v531 = vsel %vm350, %v266, 0
    %v533 = vsel %vm350, %v526, 0
    %v535 = vsel %vm350, %v528, 0
    %537 = vmatprep.subr.mxu0 0.0
    %538 = vmatpush1.xpose.msra.mxu0 0.0
    %539 = vmatprep.subr.mxu0 0.0
    %540 = vmatpush1.xpose.msra.mxu0 0.0
    %541 = vmatprep.subr.mxu0 0.0
    %542 = vmatpush1.xpose.msra.mxu0 0.0
    %543 = vmatprep.subr.mxu0 0.0
    %544 = vmatpush1.xpose.msra.mxu0 0.0
    %545 = vmatprep.subr.mxu0 0.0
    %546 = vmatpush1.xpose.msra.mxu0 0.0
    %547 = vmatprep.subr.mxu0 0.0
    %548 = vmatpush1.xpose.msra.mxu0 0.0
    %549 = vmatprep.subr.mxu0 0.0
    %550 = vmatpush1.xpose.msra.mxu0 0.0
    %551 = vmatprep.subr.mxu0 0.0
    %552 = vmatpush1.xpose.msra.mxu0 0.0
    %553 = vmatprep.subr.mxu0 0.0
    %554 = vmatpush1.xpose.msra.mxu0 0.0
    %555 = vmatprep.subr.mxu0 0.0
    %556 = vmatpush1.xpose.msra.mxu0 0.0
    %557 = vmatprep.subr.mxu0 0.0
    %558 = vmatpush1.xpose.msra.mxu0 0.0
    %559 = vmatprep.subr.mxu0 0.0
    %560 = vmatpush1.xpose.msra.mxu0 0.0
    %561 = vmatprep.subr.mxu0 0.0
    %562 = vmatpush1.xpose.msra.mxu0 0.0
    %563 = vmatprep.subr.mxu0 0.0
    %564 = vmatpush1.xpose.msra.mxu0 0.0
    %565 = vmatprep.subr.mxu0 0.0
    %566 = vmatpush1.xpose.msra.mxu0 %v535
    %567 = vmatprep.subr.mxu0 0.0
    %568 = vmatpush1.xpose.msra.mxu0 %v533
    %569 = vmatprep.subr.mxu0 0.0
    %570 = vmatpush2.xpose.msra.mxu0 0.0
    %571 = vmatprep.subr.mxu0 0.0
    %572 = vmatpush2.xpose.msra.mxu0 0.0
    %573 = vmatprep.subr.mxu0 0.0
    %574 = vmatpush2.xpose.msra.mxu0 0.0
    %575 = vmatprep.subr.mxu0 0.0
    %576 = vmatpush2.xpose.msra.mxu0 0.0
    %577 = vmatprep.subr.mxu0 0.0
    %578 = vmatpush2.xpose.msra.mxu0 0.0
    %579 = vmatprep.subr.mxu0 0.0
    %580 = vmatpush2.xpose.msra.mxu0 0.0
    %581 = vmatprep.subr.mxu0 0.0
    %582 = vmatpush2.xpose.msra.mxu0 0.0
    %583 = vmatprep.subr.mxu0 0.0
    %584 = vmatpush2.xpose.msra.mxu0 0.0
    %585 = vmatprep.subr.mxu0 0.0
    %586 = vmatpush2.xpose.msra.mxu0 0.0
    %587 = vmatprep.subr.mxu0 0.0
    %588 = vmatpush2.xpose.msra.mxu0 0.0
    %589 = vmatprep.subr.mxu0 0.0
    %590 = vmatpush2.xpose.msra.mxu0 0.0
    %591 = vmatprep.subr.mxu0 0.0
    %592 = vmatpush2.xpose.msra.mxu0 0.0
    %593 = vmatprep.subr.mxu0 0.0
    %594 = vmatpush2.xpose.msra.mxu0 0.0
    %595 = vmatprep.subr.mxu0 0.0
    %596 = vmatpush2.xpose.msra.mxu0 0.0
    %597 = vmatprep.subr.mxu0 0.0
    %598 = vmatpush2.xpose.msra.mxu0 0.0
    %599 = vmatprep.subr.mxu0 0.0
    %600 = vmatpush2.xpose.msra.mxu0 0.0
    %601 = vmatprep.mubr.f32.mxu0 0.0
    %602 = vmatmul.mubr.f32.gmra.mxu0 %v529
    %v603 = vpop.f32.mrf.mxu0
    %v604 = vadd.f32 0.0, %v603
    %v605 = vpop.f32.mrf.mxu0
    %606 = vmatprep.mubr.f32.mxu0 0.0
    %607 = vmatmul.mubr.f32.gmra.mxu0 %v531
    %v608 = vpop.f32.mrf.mxu0
    %v609 = vadd.f32 0.0, %v608
    %v610 = vpop.f32.mrf.mxu0
    %611 = vdwg.mxu0
    %614 = vrot.lane.b32.xlu0 %v336, 120
    %v615 = vpop.permute.xlu0 %614
    %616 = vrot.lane.b32.xlu0 %v341, 120
    %v617 = vpop.permute.xlu0 %616
    %v618 = vsel %vm350, %v336, 0
    %v620 = vsel %vm350, %v341, 0
    %v622 = vsel %vm350, %v615, 0
    %v624 = vsel %vm350, %v617, 0
    %626 = vmatprep.subr.mxu0 0.0
    %627 = vmatpush1.xpose.msra.mxu0 0.0
    %628 = vmatprep.subr.mxu0 0.0
    %629 = vmatpush1.xpose.msra.mxu0 0.0
    %630 = vmatprep.subr.mxu0 0.0
    %631 = vmatpush1.xpose.msra.mxu0 0.0
    %632 = vmatprep.subr.mxu0 0.0
    %633 = vmatpush1.xpose.msra.mxu0 0.0
    %634 = vmatprep.subr.mxu0 0.0
    %635 = vmatpush1.xpose.msra.mxu0 0.0
    %636 = vmatprep.subr.mxu0 0.0
    %637 = vmatpush1.xpose.msra.mxu0 0.0
    %638 = vmatprep.subr.mxu0 0.0
    %639 = vmatpush1.xpose.msra.mxu0 0.0
    %640 = vmatprep.subr.mxu0 0.0
    %641 = vmatpush1.xpose.msra.mxu0 0.0
    %642 = vmatprep.subr.mxu0 0.0
    %643 = vmatpush1.xpose.msra.mxu0 0.0
    %644 = vmatprep.subr.mxu0 0.0
    %645 = vmatpush1.xpose.msra.mxu0 0.0
    %646 = vmatprep.subr.mxu0 0.0
    %647 = vmatpush1.xpose.msra.mxu0 0.0
    %648 = vmatprep.subr.mxu0 0.0
    %649 = vmatpush1.xpose.msra.mxu0 0.0
    %650 = vmatprep.subr.mxu0 0.0
    %651 = vmatpush1.xpose.msra.mxu0 0.0
    %652 = vmatprep.subr.mxu0 0.0
    %653 = vmatpush1.xpose.msra.mxu0 0.0
    %654 = vmatprep.subr.mxu0 0.0
    %655 = vmatpush1.xpose.msra.mxu0 %v624
    %656 = vmatprep.subr.mxu0 0.0
    %657 = vmatpush1.xpose.msra.mxu0 %v622
    %658 = vmatprep.subr.mxu0 0.0
    %659 = vmatpush2.xpose.msra.mxu0 0.0
    %660 = vmatprep.subr.mxu0 0.0
    %661 = vmatpush2.xpose.msra.mxu0 0.0
    %662 = vmatprep.subr.mxu0 0.0
    %663 = vmatpush2.xpose.msra.mxu0 0.0
    %664 = vmatprep.subr.mxu0 0.0
    %665 = vmatpush2.xpose.msra.mxu0 0.0
    %666 = vmatprep.subr.mxu0 0.0
    %667 = vmatpush2.xpose.msra.mxu0 0.0
    %668 = vmatprep.subr.mxu0 0.0
    %669 = vmatpush2.xpose.msra.mxu0 0.0
    %670 = vmatprep.subr.mxu0 0.0
    %671 = vmatpush2.xpose.msra.mxu0 0.0
    %672 = vmatprep.subr.mxu0 0.0
    %673 = vmatpush2.xpose.msra.mxu0 0.0
    %674 = vmatprep.subr.mxu0 0.0
    %675 = vmatpush2.xpose.msra.mxu0 0.0
    %676 = vmatprep.subr.mxu0 0.0
    %677 = vmatpush2.xpose.msra.mxu0 0.0
    %678 = vmatprep.subr.mxu0 0.0
    %679 = vmatpush2.xpose.msra.mxu0 0.0
    %680 = vmatprep.subr.mxu0 0.0
    %681 = vmatpush2.xpose.msra.mxu0 0.0
    %682 = vmatprep.subr.mxu0 0.0
    %683 = vmatpush2.xpose.msra.mxu0 0.0
    %684 = vmatprep.subr.mxu0 0.0
    %685 = vmatpush2.xpose.msra.mxu0 0.0
    %686 = vmatprep.subr.mxu0 0.0
    %687 = vmatpush2.xpose.msra.mxu0 0.0
    %688 = vmatprep.subr.mxu0 0.0
    %689 = vmatpush2.xpose.msra.mxu0 0.0
    %690 = vmatprep.mubr.f32.mxu0 0.0
    %691 = vmatmul.mubr.f32.gmra.mxu0 %v618
    %v692 = vpop.f32.mrf.mxu0
    %v693 = vadd.f32 0.0, %v692
    %v694 = vpop.f32.mrf.mxu0
    %695 = vmatprep.mubr.f32.mxu0 0.0
    %696 = vmatmul.mubr.f32.gmra.mxu0 %v620
    %v697 = vpop.f32.mrf.mxu0
    %v698 = vadd.f32 0.0, %v697
    %v699 = vpop.f32.mrf.mxu0
    %700 = vdwg.mxu0
    %701 = vrot.lane.b32.xlu0 %v15, 96
    %v702 = vpop.permute.xlu0 %701
    %703 = vrot.lane.b32.xlu0 %v16, 96
    %v704 = vpop.permute.xlu0 %703
    %v707 = vmul.f32 %v426, %v702
    %v708 = vmul.f32 %v431, %v704
    %v709 = vmul.f32 %v515, %v702
    %v710 = vmul.f32 %v520, %v704
    %v711 = vmul.f32 %v604, %v702
    %v712 = vmul.f32 %v609, %v704
    %v713 = vmul.f32 %v693, %v702
    %v714 = vmul.f32 %v698, %v704
    %715 = vrot.lane.b32.xlu0 %v15, 80
    %v716 = vpop.permute.xlu0 %715
    %717 = vrot.lane.b32.xlu0 %v16, 80
    %v718 = vpop.permute.xlu0 %717
    %v721 = vadd.f32 %v707, %v716
    %v722 = vadd.f32 %v708, %v718
    %v723 = vadd.f32 %v709, %v716
    %v724 = vadd.f32 %v710, %v718
    %v725 = vadd.f32 %v711, %v716
    %v726 = vadd.f32 %v712, %v718
    %v727 = vadd.f32 %v713, %v716
    %v728 = vadd.f32 %v714, %v718
    %vm729 = vcmask 130048
    %v730 = vsel %vm729, %v721, -inf
    %731 = vmax.xlane.f32.xlu0 %v730
    %v732 = vpop.xlane.xlu0 %731
    %v733 = vsel %vm729, %v722, -inf
    %734 = vmax.xlane.f32.xlu0 %v733
    %v735 = vpop.xlane.xlu0 %734
    %v736 = vsel %vm729, %v723, -inf
    %737 = vmax.xlane.f32.xlu0 %v736
    %v738 = vpop.xlane.xlu0 %737
    %v739 = vsel %vm729, %v724, -inf
    %740 = vmax.xlane.f32.xlu0 %v739
    %v741 = vpop.xlane.xlu0 %740
    %v742 = vsel %vm729, %v725, -inf
    %743 = vmax.xlane.f32.xlu0 %v742
    %v744 = vpop.xlane.xlu0 %743
    %v745 = vsel %vm729, %v726, -inf
    %746 = vmax.xlane.f32.xlu0 %v745
    %v747 = vpop.xlane.xlu0 %746
    %v748 = vsel %vm729, %v727, -inf
    %749 = vmax.xlane.f32.xlu0 %v748
    %v750 = vpop.xlane.xlu0 %749
    %v751 = vsel %vm729, %v728, -inf
    %752 = vmax.xlane.f32.xlu0 %v751
    %v753 = vpop.xlane.xlu0 %752
    %v754 = vsub.f32 %v721, %v732
    %v755 = vsub.f32 %v722, %v735
    %v756 = vsub.f32 %v723, %v738
    %v757 = vsub.f32 %v724, %v741
    %v758 = vsub.f32 %v725, %v744
    %v759 = vsub.f32 %v726, %v747
    %v760 = vsub.f32 %v727, %v750
    %v761 = vsub.f32 %v728, %v753
    %v762 = vmul.f32 %v754, 1.442695
    %v763 = vpow.pop %v762
    %v764 = vmul.f32 %v755, 1.442695
    %v765 = vpow.pop %v764
    %v766 = vmul.f32 %v756, 1.442695
    %v767 = vpow.pop %v766
    %v768 = vmul.f32 %v757, 1.442695
    %v769 = vpow.pop %v768
    %v770 = vmul.f32 %v758, 1.442695
    %v771 = vpow.pop %v770
    %v772 = vmul.f32 %v759, 1.442695
    %v773 = vpow.pop %v772
    %v774 = vmul.f32 %v760, 1.442695
    %v775 = vpow.pop %v774
    %v776 = vmul.f32 %v761, 1.442695
    %v777 = vpow.pop %v776
    %v778 = vsel %vm729, %v763, 0.0
    %779 = vadd.xlane.f32.xlu0 %v778
    %v780 = vpop.xlane.xlu0 %779
    %v781 = vsel %vm729, %v765, 0.0
    %782 = vadd.xlane.f32.xlu0 %v781
    %v783 = vpop.xlane.xlu0 %782
    %v784 = vsel %vm729, %v767, 0.0
    %785 = vadd.xlane.f32.xlu0 %v784
    %v786 = vpop.xlane.xlu0 %785
    %v787 = vsel %vm729, %v769, 0.0
    %788 = vadd.xlane.f32.xlu0 %v787
    %v789 = vpop.xlane.xlu0 %788
    %v790 = vsel %vm729, %v771, 0.0
    %791 = vadd.xlane.f32.xlu0 %v790
    %v792 = vpop.xlane.xlu0 %791
    %v793 = vsel %vm729, %v773, 0.0
    %794 = vadd.xlane.f32.xlu0 %v793
    %v795 = vpop.xlane.xlu0 %794
    %v796 = vsel %vm729, %v775, 0.0
    %797 = vadd.xlane.f32.xlu0 %v796
    %v798 = vpop.xlane.xlu0 %797
    %v799 = vsel %vm729, %v777, 0.0
    %800 = vadd.xlane.f32.xlu0 %v799
    %v801 = vpop.xlane.xlu0 %800
    %v802 = vrcp.pop %v780
    %v803 = vrcp.pop %v783
    %v804 = vrcp.pop %v786
    %v805 = vrcp.pop %v789
    %v806 = vrcp.pop %v792
    %v807 = vrcp.pop %v795
    %v808 = vrcp.pop %v798
    %v809 = vrcp.pop %v801
    %v810 = vmul.f32 %v780, %v802
    %v811 = vmul.f32 %v783, %v803
    %v812 = vmul.f32 %v786, %v804
    %v813 = vmul.f32 %v789, %v805
    %v814 = vmul.f32 %v792, %v806
    %v815 = vmul.f32 %v795, %v807
    %v816 = vmul.f32 %v798, %v808
    %v817 = vmul.f32 %v801, %v809
    %v818 = vsub.f32 2.0, %v810
    %v819 = vsub.f32 2.0, %v811
    %v820 = vsub.f32 2.0, %v812
    %v821 = vsub.f32 2.0, %v813
    %v822 = vsub.f32 2.0, %v814
    %v823 = vsub.f32 2.0, %v815
    %v824 = vsub.f32 2.0, %v816
    %v825 = vsub.f32 2.0, %v817
    %v826 = vmul.f32 %v802, %v818
    %v827 = vmul.f32 %v803, %v819
    %v828 = vmul.f32 %v804, %v820
    %v829 = vmul.f32 %v805, %v821
    %v830 = vmul.f32 %v806, %v822
    %v831 = vmul.f32 %v807, %v823
    %v832 = vmul.f32 %v808, %v824
    %v833 = vmul.f32 %v809, %v825
    %v834 = vmul.f32 %v763, %v826
    %v835 = vmul.f32 %v765, %v827
    %v836 = vmul.f32 %v767, %v828
    %v837 = vmul.f32 %v769, %v829
    %v838 = vmul.f32 %v771, %v830
    %v839 = vmul.f32 %v773, %v831
    %v840 = vmul.f32 %v775, %v832
    %v841 = vmul.f32 %v777, %v833
    %846 = vrot.lane.b32.xlu0 %v835, 120
    %v847 = vpop.permute.xlu0 %846
    %848 = vrot.lane.b32.xlu0 %v837, 120
    %v849 = vpop.permute.xlu0 %848
    %850 = vrot.lane.b32.xlu0 %v839, 120
    %v851 = vpop.permute.xlu0 %850
    %852 = vrot.lane.b32.xlu0 %v841, 120
    %v853 = vpop.permute.xlu0 %852
    %858 = vst.msk [vmem:[#allocation4] sm:$0xff] %vm350, %v834
    %859 = vst.msk [vmem:[#allocation4 + $0x8] sm:$0xff] %vm350, %v836
    %860 = vst.msk [vmem:[#allocation4 + $0x10] sm:$0xff] %vm350, %v838
    %861 = vst.msk [vmem:[#allocation4 + $0x18] sm:$0xff] %vm350, %v840
    %862 = vst.msk [vmem:[#allocation4 + $0x20] sm:$0xff] %vm350, %v847
    %863 = vst.msk [vmem:[#allocation4 + $0x28] sm:$0xff] %vm350, %v849
    %864 = vst.msk [vmem:[#allocation4 + $0x30] sm:$0xff] %vm350, %v851
    %865 = vst.msk [vmem:[#allocation4 + $0x38] sm:$0xff] %vm350, %v853
    %866 = vrot.lane.b32.xlu0 %v111, 112
    %v867 = vpop.permute.xlu0 %866
    %868 = vrot.lane.b32.xlu0 %v116, 112
    %v869 = vpop.permute.xlu0 %868
    %v873 = vsel %vm729, %v834, 0
    %v875 = vsel %vm729, %v835, 0
    %877 = vmatprep.subr.mxu0 0.0
    %878 = vmatpush1.msra.mxu0 0.0
    %879 = vmatprep.subr.mxu0 0.0
    %880 = vmatpush1.msra.mxu0 0.0
    %881 = vmatprep.subr.mxu0 0.0
    %882 = vmatpush1.msra.mxu0 0.0
    %883 = vmatprep.subr.mxu0 0.0
    %884 = vmatpush1.msra.mxu0 0.0
    %885 = vmatprep.subr.mxu0 0.0
    %886 = vmatpush1.msra.mxu0 0.0
    %887 = vmatprep.subr.mxu0 0.0
    %888 = vmatpush1.msra.mxu0 0.0
    %889 = vmatprep.subr.mxu0 0.0
    %890 = vmatpush1.msra.mxu0 0.0
    %891 = vmatprep.subr.mxu0 0.0
    %892 = vmatpush1.msra.mxu0 0.0
    %893 = vmatprep.subr.mxu0 0.0
    %894 = vmatpush1.msra.mxu0 0.0
    %895 = vmatprep.subr.mxu0 0.0
    %896 = vmatpush1.msra.mxu0 0.0
    %897 = vmatprep.subr.mxu0 0.0
    %898 = vmatpush1.msra.mxu0 0.0
    %899 = vmatprep.subr.mxu0 0.0
    %900 = vmatpush1.msra.mxu0 0.0
    %901 = vmatprep.subr.mxu0 0.0
    %902 = vmatpush1.msra.mxu0 0.0
    %903 = vmatprep.subr.mxu0 0.0
    %904 = vmatpush1.msra.mxu0 0.0
    %905 = vmatprep.subr.mxu0 0.0
    %906 = vmatpush1.msra.mxu0 %v869
    %907 = vmatprep.subr.mxu0 0.0
    %908 = vmatpush1.msra.mxu0 %v867
    %909 = vmatprep.subr.mxu0 0.0
    %910 = vmatpush2.msra.mxu0 0.0
    %911 = vmatprep.subr.mxu0 0.0
    %912 = vmatpush2.msra.mxu0 0.0
    %913 = vmatprep.subr.mxu0 0.0
    %914 = vmatpush2.msra.mxu0 0.0
    %915 = vmatprep.subr.mxu0 0.0
    %916 = vmatpush2.msra.mxu0 0.0
    %917 = vmatprep.subr.mxu0 0.0
    %918 = vmatpush2.msra.mxu0 0.0
    %919 = vmatprep.subr.mxu0 0.0
    %920 = vmatpush2.msra.mxu0 0.0
    %921 = vmatprep.subr.mxu0 0.0
    %922 = vmatpush2.msra.mxu0 0.0
    %923 = vmatprep.subr.mxu0 0.0
    %924 = vmatpush2.msra.mxu0 0.0
    %925 = vmatprep.subr.mxu0 0.0
    %926 = vmatpush2.msra.mxu0 0.0
    %927 = vmatprep.subr.mxu0 0.0
    %928 = vmatpush2.msra.mxu0 0.0
    %929 = vmatprep.subr.mxu0 0.0
    %930 = vmatpush2.msra.mxu0 0.0
    %931 = vmatprep.subr.mxu0 0.0
    %932 = vmatpush2.msra.mxu0 0.0
    %933 = vmatprep.subr.mxu0 0.0
    %934 = vmatpush2.msra.mxu0 0.0
    %935 = vmatprep.subr.mxu0 0.0
    %936 = vmatpush2.msra.mxu0 0.0
    %937 = vmatprep.subr.mxu0 0.0
    %938 = vmatpush2.msra.mxu0 0.0
    %939 = vmatprep.subr.mxu0 0.0
    %940 = vmatpush2.msra.mxu0 0.0
    %941 = vmatprep.mubr.f32.mxu0 0.0
    %942 = vmatmul.mubr.f32.gmra.mxu0 %v873
    %v943 = vpop.f32.mrf.mxu0
    %v944 = vadd.f32 0.0, %v943
    %v945 = vpop.f32.mrf.mxu0
    %946 = vmatprep.mubr.f32.mxu0 0.0
    %947 = vmatmul.mubr.f32.gmra.mxu0 %v875
    %v948 = vpop.f32.mrf.mxu0
    %v949 = vadd.f32 0.0, %v948
    %v950 = vpop.f32.mrf.mxu0
    %951 = vdwg.mxu0
    %952 = vrot.lane.b32.xlu0 %v186, 112
    %v953 = vpop.permute.xlu0 %952
    %954 = vrot.lane.b32.xlu0 %v191, 112
    %v955 = vpop.permute.xlu0 %954
    %v959 = vsel %vm729, %v836, 0
    %v961 = vsel %vm729, %v837, 0
    %963 = vmatprep.subr.mxu0 0.0
    %964 = vmatpush1.msra.mxu0 0.0
    %965 = vmatprep.subr.mxu0 0.0
    %966 = vmatpush1.msra.mxu0 0.0
    %967 = vmatprep.subr.mxu0 0.0
    %968 = vmatpush1.msra.mxu0 0.0
    %969 = vmatprep.subr.mxu0 0.0
    %970 = vmatpush1.msra.mxu0 0.0
    %971 = vmatprep.subr.mxu0 0.0
    %972 = vmatpush1.msra.mxu0 0.0
    %973 = vmatprep.subr.mxu0 0.0
    %974 = vmatpush1.msra.mxu0 0.0
    %975 = vmatprep.subr.mxu0 0.0
    %976 = vmatpush1.msra.mxu0 0.0
    %977 = vmatprep.subr.mxu0 0.0
    %978 = vmatpush1.msra.mxu0 0.0
    %979 = vmatprep.subr.mxu0 0.0
    %980 = vmatpush1.msra.mxu0 0.0
    %981 = vmatprep.subr.mxu0 0.0
    %982 = vmatpush1.msra.mxu0 0.0
    %983 = vmatprep.subr.mxu0 0.0
    %984 = vmatpush1.msra.mxu0 0.0
    %985 = vmatprep.subr.mxu0 0.0
    %986 = vmatpush1.msra.mxu0 0.0
    %987 = vmatprep.subr.mxu0 0.0
    %988 = vmatpush1.msra.mxu0 0.0
    %989 = vmatprep.subr.mxu0 0.0
    %990 = vmatpush1.msra.mxu0 0.0
    %991 = vmatprep.subr.mxu0 0.0
    %992 = vmatpush1.msra.mxu0 %v955
    %993 = vmatprep.subr.mxu0 0.0
    %994 = vmatpush1.msra.mxu0 %v953
    %995 = vmatprep.subr.mxu0 0.0
    %996 = vmatpush2.msra.mxu0 0.0
    %997 = vmatprep.subr.mxu0 0.0
    %998 = vmatpush2.msra.mxu0 0.0
    %999 = vmatprep.subr.mxu0 0.0
    %1000 = vmatpush2.msra.mxu0 0.0
    %1001 = vmatprep.subr.mxu0 0.0
    %1002 = vmatpush2.msra.mxu0 0.0
    %1003 = vmatprep.subr.mxu0 0.0
    %1004 = vmatpush2.msra.mxu0 0.0
    %1005 = vmatprep.subr.mxu0 0.0
    %1006 = vmatpush2.msra.mxu0 0.0
    %1007 = vmatprep.subr.mxu0 0.0
    %1008 = vmatpush2.msra.mxu0 0.0
    %1009 = vmatprep.subr.mxu0 0.0
    %1010 = vmatpush2.msra.mxu0 0.0
    %1011 = vmatprep.subr.mxu0 0.0
    %1012 = vmatpush2.msra.mxu0 0.0
    %1013 = vmatprep.subr.mxu0 0.0
    %1014 = vmatpush2.msra.mxu0 0.0
    %1015 = vmatprep.subr.mxu0 0.0
    %1016 = vmatpush2.msra.mxu0 0.0
    %1017 = vmatprep.subr.mxu0 0.0
    %1018 = vmatpush2.msra.mxu0 0.0
    %1019 = vmatprep.subr.mxu0 0.0
    %1020 = vmatpush2.msra.mxu0 0.0
    %1021 = vmatprep.subr.mxu0 0.0
    %1022 = vmatpush2.msra.mxu0 0.0
    %1023 = vmatprep.subr.mxu0 0.0
    %1024 = vmatpush2.msra.mxu0 0.0
    %1025 = vmatprep.subr.mxu0 0.0
    %1026 = vmatpush2.msra.mxu0 0.0
    %1027 = vmatprep.mubr.f32.mxu0 0.0
    %1028 = vmatmul.mubr.f32.gmra.mxu0 %v959
    %v1029 = vpop.f32.mrf.mxu0
    %v1030 = vadd.f32 0.0, %v1029
    %v1031 = vpop.f32.mrf.mxu0
    %1032 = vmatprep.mubr.f32.mxu0 0.0
    %1033 = vmatmul.mubr.f32.gmra.mxu0 %v961
    %v1034 = vpop.f32.mrf.mxu0
    %v1035 = vadd.f32 0.0, %v1034
    %v1036 = vpop.f32.mrf.mxu0
    %1037 = vdwg.mxu0
    %1038 = vrot.lane.b32.xlu0 %v261, 112
    %v1039 = vpop.permute.xlu0 %1038
    %1040 = vrot.lane.b32.xlu0 %v266, 112
    %v1041 = vpop.permute.xlu0 %1040
    %v1045 = vsel %vm729, %v838, 0
    %v1047 = vsel %vm729, %v839, 0
    %1049 = vmatprep.subr.mxu0 0.0
    %1050 = vmatpush1.msra.mxu0 0.0
    %1051 = vmatprep.subr.mxu0 0.0
    %1052 = vmatpush1.msra.mxu0 0.0
    %1053 = vmatprep.subr.mxu0 0.0
    %1054 = vmatpush1.msra.mxu0 0.0
    %1055 = vmatprep.subr.mxu0 0.0
    %1056 = vmatpush1.msra.mxu0 0.0
    %1057 = vmatprep.subr.mxu0 0.0
    %1058 = vmatpush1.msra.mxu0 0.0
    %1059 = vmatprep.subr.mxu0 0.0
    %1060 = vmatpush1.msra.mxu0 0.0
    %1061 = vmatprep.subr.mxu0 0.0
    %1062 = vmatpush1.msra.mxu0 0.0
    %1063 = vmatprep.subr.mxu0 0.0
    %1064 = vmatpush1.msra.mxu0 0.0
    %1065 = vmatprep.subr.mxu0 0.0
    %1066 = vmatpush1.msra.mxu0 0.0
    %1067 = vmatprep.subr.mxu0 0.0
    %1068 = vmatpush1.msra.mxu0 0.0
    %1069 = vmatprep.subr.mxu0 0.0
    %1070 = vmatpush1.msra.mxu0 0.0
    %1071 = vmatprep.subr.mxu0 0.0
    %1072 = vmatpush1.msra.mxu0 0.0
    %1073 = vmatprep.subr.mxu0 0.0
    %1074 = vmatpush1.msra.mxu0 0.0
    %1075 = vmatprep.subr.mxu0 0.0
    %1076 = vmatpush1.msra.mxu0 0.0
    %1077 = vmatprep.subr.mxu0 0.0
    %1078 = vmatpush1.msra.mxu0 %v1041
    %1079 = vmatprep.subr.mxu0 0.0
    %1080 = vmatpush1.msra.mxu0 %v1039
    %1081 = vmatprep.subr.mxu0 0.0
    %1082 = vmatpush2.msra.mxu0 0.0
    %1083 = vmatprep.subr.mxu0 0.0
    %1084 = vmatpush2.msra.mxu0 0.0
    %1085 = vmatprep.subr.mxu0 0.0
    %1086 = vmatpush2.msra.mxu0 0.0
    %1087 = vmatprep.subr.mxu0 0.0
    %1088 = vmatpush2.msra.mxu0 0.0
    %1089 = vmatprep.subr.mxu0 0.0
    %1090 = vmatpush2.msra.mxu0 0.0
    %1091 = vmatprep.subr.mxu0 0.0
    %1092 = vmatpush2.msra.mxu0 0.0
    %1093 = vmatprep.subr.mxu0 0.0
    %1094 = vmatpush2.msra.mxu0 0.0
    %1095 = vmatprep.subr.mxu0 0.0
    %1096 = vmatpush2.msra.mxu0 0.0
    %1097 = vmatprep.subr.mxu0 0.0
    %1098 = vmatpush2.msra.mxu0 0.0
    %1099 = vmatprep.subr.mxu0 0.0
    %1100 = vmatpush2.msra.mxu0 0.0
    %1101 = vmatprep.subr.mxu0 0.0
    %1102 = vmatpush2.msra.mxu0 0.0
    %1103 = vmatprep.subr.mxu0 0.0
    %1104 = vmatpush2.msra.mxu0 0.0
    %1105 = vmatprep.subr.mxu0 0.0
    %1106 = vmatpush2.msra.mxu0 0.0
    %1107 = vmatprep.subr.mxu0 0.0
    %1108 = vmatpush2.msra.mxu0 0.0
    %1109 = vmatprep.subr.mxu0 0.0
    %1110 = vmatpush2.msra.mxu0 0.0
    %1111 = vmatprep.subr.mxu0 0.0
    %1112 = vmatpush2.msra.mxu0 0.0
    %1113 = vmatprep.mubr.f32.mxu0 0.0
    %1114 = vmatmul.mubr.f32.gmra.mxu0 %v1045
    %v1115 = vpop.f32.mrf.mxu0
    %v1116 = vadd.f32 0.0, %v1115
    %v1117 = vpop.f32.mrf.mxu0
    %1118 = vmatprep.mubr.f32.mxu0 0.0
    %1119 = vmatmul.mubr.f32.gmra.mxu0 %v1047
    %v1120 = vpop.f32.mrf.mxu0
    %v1121 = vadd.f32 0.0, %v1120
    %v1122 = vpop.f32.mrf.mxu0
    %1123 = vdwg.mxu0
    %1124 = vrot.lane.b32.xlu0 %v336, 112
    %v1125 = vpop.permute.xlu0 %1124
    %1126 = vrot.lane.b32.xlu0 %v341, 112
    %v1127 = vpop.permute.xlu0 %1126
    %v1131 = vsel %vm729, %v840, 0
    %v1133 = vsel %vm729, %v841, 0
    %1135 = vmatprep.subr.mxu0 0.0
    %1136 = vmatpush1.msra.mxu0 0.0
    %1137 = vmatprep.subr.mxu0 0.0
    %1138 = vmatpush1.msra.mxu0 0.0
    %1139 = vmatprep.subr.mxu0 0.0
    %1140 = vmatpush1.msra.mxu0 0.0
    %1141 = vmatprep.subr.mxu0 0.0
    %1142 = vmatpush1.msra.mxu0 0.0
    %1143 = vmatprep.subr.mxu0 0.0
    %1144 = vmatpush1.msra.mxu0 0.0
    %1145 = vmatprep.subr.mxu0 0.0
    %1146 = vmatpush1.msra.mxu0 0.0
    %1147 = vmatprep.subr.mxu0 0.0
    %1148 = vmatpush1.msra.mxu0 0.0
    %1149 = vmatprep.subr.mxu0 0.0
    %1150 = vmatpush1.msra.mxu0 0.0
    %1151 = vmatprep.subr.mxu0 0.0
    %1152 = vmatpush1.msra.mxu0 0.0
    %1153 = vmatprep.subr.mxu0 0.0
    %1154 = vmatpush1.msra.mxu0 0.0
    %1155 = vmatprep.subr.mxu0 0.0
    %1156 = vmatpush1.msra.mxu0 0.0
    %1157 = vmatprep.subr.mxu0 0.0
    %1158 = vmatpush1.msra.mxu0 0.0
    %1159 = vmatprep.subr.mxu0 0.0
    %1160 = vmatpush1.msra.mxu0 0.0
    %1161 = vmatprep.subr.mxu0 0.0
    %1162 = vmatpush1.msra.mxu0 0.0
    %1163 = vmatprep.subr.mxu0 0.0
    %1164 = vmatpush1.msra.mxu0 %v1127
    %1165 = vmatprep.subr.mxu0 0.0
    %1166 = vmatpush1.msra.mxu0 %v1125
    %1167 = vmatprep.subr.mxu0 0.0
    %1168 = vmatpush2.msra.mxu0 0.0
    %1169 = vmatprep.subr.mxu0 0.0
    %1170 = vmatpush2.msra.mxu0 0.0
    %1171 = vmatprep.subr.mxu0 0.0
    %1172 = vmatpush2.msra.mxu0 0.0
    %1173 = vmatprep.subr.mxu0 0.0
    %1174 = vmatpush2.msra.mxu0 0.0
    %1175 = vmatprep.subr.mxu0 0.0
    %1176 = vmatpush2.msra.mxu0 0.0
    %1177 = vmatprep.subr.mxu0 0.0
    %1178 = vmatpush2.msra.mxu0 0.0
    %1179 = vmatprep.subr.mxu0 0.0
    %1180 = vmatpush2.msra.mxu0 0.0
    %1181 = vmatprep.subr.mxu0 0.0
    %1182 = vmatpush2.msra.mxu0 0.0
    %1183 = vmatprep.subr.mxu0 0.0
    %1184 = vmatpush2.msra.mxu0 0.0
    %1185 = vmatprep.subr.mxu0 0.0
    %1186 = vmatpush2.msra.mxu0 0.0
    %1187 = vmatprep.subr.mxu0 0.0
    %1188 = vmatpush2.msra.mxu0 0.0
    %1189 = vmatprep.subr.mxu0 0.0
    %1190 = vmatpush2.msra.mxu0 0.0
    %1191 = vmatprep.subr.mxu0 0.0
    %1192 = vmatpush2.msra.mxu0 0.0
    %1193 = vmatprep.subr.mxu0 0.0
    %1194 = vmatpush2.msra.mxu0 0.0
    %1195 = vmatprep.subr.mxu0 0.0
    %1196 = vmatpush2.msra.mxu0 0.0
    %1197 = vmatprep.subr.mxu0 0.0
    %1198 = vmatpush2.msra.mxu0 0.0
    %1199 = vmatprep.mubr.f32.mxu0 0.0
    %1200 = vmatmul.mubr.f32.gmra.mxu0 %v1131
    %v1201 = vpop.f32.mrf.mxu0
    %v1202 = vadd.f32 0.0, %v1201
    %v1203 = vpop.f32.mrf.mxu0
    %1204 = vmatprep.mubr.f32.mxu0 0.0
    %1205 = vmatmul.mubr.f32.gmra.mxu0 %v1133
    %v1206 = vpop.f32.mrf.mxu0
    %v1207 = vadd.f32 0.0, %v1206
    %v1208 = vpop.f32.mrf.mxu0
    %1209 = vdwg.mxu0
    %v1211 = vsel %vm350, %v944, 0
    %v1214 = vsel %vm350, %v949, 0
    %1216 = vmatprep.subr.mxu0 0.0
    %1217 = vmatpush1.msra.mxu0 0.0
    %1218 = vmatprep.subr.mxu0 0.0
    %1219 = vmatpush1.msra.mxu0 0.0
    %1220 = vmatprep.subr.mxu0 0.0
    %1221 = vmatpush1.msra.mxu0 0.0
    %1222 = vmatprep.subr.mxu0 0.0
    %1223 = vmatpush1.msra.mxu0 0.0
    %1224 = vmatprep.subr.mxu0 0.0
    %1225 = vmatpush1.msra.mxu0 0.0
    %1226 = vmatprep.subr.mxu0 0.0
    %1227 = vmatpush1.msra.mxu0 0.0
    %1228 = vmatprep.subr.mxu0 0.0
    %1229 = vmatpush1.msra.mxu0 0.0
    %1230 = vmatprep.subr.mxu0 0.0
    %1231 = vmatpush1.msra.mxu0 0.0
    %1232 = vmatprep.subr.mxu0 0.0
    %1233 = vmatpush1.msra.mxu0 0.0
    %1234 = vmatprep.subr.mxu0 0.0
    %1235 = vmatpush1.msra.mxu0 0.0
    %1236 = vmatprep.subr.mxu0 0.0
    %1237 = vmatpush1.msra.mxu0 0.0
    %1238 = vmatprep.subr.mxu0 0.0
    %1239 = vmatpush1.msra.mxu0 0.0
    %1240 = vmatprep.subr.mxu0 0.0
    %1241 = vmatpush1.msra.mxu0 0.0
    %1242 = vmatprep.subr.mxu0 0.0
    %1243 = vmatpush1.msra.mxu0 0.0
    %1244 = vmatprep.subr.mxu0 0.0
    %1245 = vmatpush1.msra.mxu0 0.0
    %1246 = vmatprep.subr.mxu0 0.0
    %1247 = vmatpush1.msra.mxu0 %v21
    %1248 = vmatprep.subr.mxu0 0.0
    %1249 = vmatpush2.msra.mxu0 0.0
    %1250 = vmatprep.subr.mxu0 0.0
    %1251 = vmatpush2.msra.mxu0 0.0
    %1252 = vmatprep.subr.mxu0 0.0
    %1253 = vmatpush2.msra.mxu0 0.0
    %1254 = vmatprep.subr.mxu0 0.0
    %1255 = vmatpush2.msra.mxu0 0.0
    %1256 = vmatprep.subr.mxu0 0.0
    %1257 = vmatpush2.msra.mxu0 0.0
    %1258 = vmatprep.subr.mxu0 0.0
    %1259 = vmatpush2.msra.mxu0 0.0
    %1260 = vmatprep.subr.mxu0 0.0
    %1261 = vmatpush2.msra.mxu0 0.0
    %1262 = vmatprep.subr.mxu0 0.0
    %1263 = vmatpush2.msra.mxu0 0.0
    %1264 = vmatprep.subr.mxu0 0.0
    %1265 = vmatpush2.msra.mxu0 0.0
    %1266 = vmatprep.subr.mxu0 0.0
    %1267 = vmatpush2.msra.mxu0 0.0
    %1268 = vmatprep.subr.mxu0 0.0
    %1269 = vmatpush2.msra.mxu0 0.0
    %1270 = vmatprep.subr.mxu0 0.0
    %1271 = vmatpush2.msra.mxu0 0.0
    %1272 = vmatprep.subr.mxu0 0.0
    %1273 = vmatpush2.msra.mxu0 0.0
    %1274 = vmatprep.subr.mxu0 0.0
    %1275 = vmatpush2.msra.mxu0 0.0
    %1276 = vmatprep.subr.mxu0 0.0
    %1277 = vmatpush2.msra.mxu0 0.0
    %1278 = vmatprep.subr.mxu0 0.0
    %1279 = vmatpush2.msra.mxu0 0.0
    %1280 = vmatprep.mubr.f32.mxu0 0.0
    %1281 = vmatmul.mubr.f32.gmra.mxu0 %v1211
    %v1282 = vpop.f32.mrf.mxu0
    %v1283 = vadd.f32 0.0, %v1282
    %v1284 = vpop.f32.mrf.mxu0
    %1285 = vmatprep.mubr.f32.mxu0 0.0
    %1286 = vmatmul.mubr.f32.gmra.mxu0 %v1214
    %v1287 = vpop.f32.mrf.mxu0
    %v1288 = vadd.f32 0.0, %v1287
    %v1289 = vpop.f32.mrf.mxu0
    %1290 = vdwg.mxu0
    %v1292 = vsel %vm350, %v1030, 0
    %v1295 = vsel %vm350, %v1035, 0
    %1297 = vmatprep.subr.mxu0 0.0
    %1298 = vmatpush1.msra.mxu0 0.0
    %1299 = vmatprep.subr.mxu0 0.0
    %1300 = vmatpush1.msra.mxu0 0.0
    %1301 = vmatprep.subr.mxu0 0.0
    %1302 = vmatpush1.msra.mxu0 0.0
    %1303 = vmatprep.subr.mxu0 0.0
    %1304 = vmatpush1.msra.mxu0 0.0
    %1305 = vmatprep.subr.mxu0 0.0
    %1306 = vmatpush1.msra.mxu0 0.0
    %1307 = vmatprep.subr.mxu0 0.0
    %1308 = vmatpush1.msra.mxu0 0.0
    %1309 = vmatprep.subr.mxu0 0.0
    %1310 = vmatpush1.msra.mxu0 0.0
    %1311 = vmatprep.subr.mxu0 0.0
    %1312 = vmatpush1.msra.mxu0 0.0
    %1313 = vmatprep.subr.mxu0 0.0
    %1314 = vmatpush1.msra.mxu0 0.0
    %1315 = vmatprep.subr.mxu0 0.0
    %1316 = vmatpush1.msra.mxu0 0.0
    %1317 = vmatprep.subr.mxu0 0.0
    %1318 = vmatpush1.msra.mxu0 0.0
    %1319 = vmatprep.subr.mxu0 0.0
    %1320 = vmatpush1.msra.mxu0 0.0
    %1321 = vmatprep.subr.mxu0 0.0
    %1322 = vmatpush1.msra.mxu0 0.0
    %1323 = vmatprep.subr.mxu0 0.0
    %1324 = vmatpush1.msra.mxu0 0.0
    %1325 = vmatprep.subr.mxu0 0.0
    %1326 = vmatpush1.msra.mxu0 0.0
    %1327 = vmatprep.subr.mxu0 0.0
    %1328 = vmatpush1.msra.mxu0 %v26
    %1329 = vmatprep.subr.mxu0 0.0
    %1330 = vmatpush2.msra.mxu0 0.0
    %1331 = vmatprep.subr.mxu0 0.0
    %1332 = vmatpush2.msra.mxu0 0.0
    %1333 = vmatprep.subr.mxu0 0.0
    %1334 = vmatpush2.msra.mxu0 0.0
    %1335 = vmatprep.subr.mxu0 0.0
    %1336 = vmatpush2.msra.mxu0 0.0
    %1337 = vmatprep.subr.mxu0 0.0
    %1338 = vmatpush2.msra.mxu0 0.0
    %1339 = vmatprep.subr.mxu0 0.0
    %1340 = vmatpush2.msra.mxu0 0.0
    %1341 = vmatprep.subr.mxu0 0.0
    %1342 = vmatpush2.msra.mxu0 0.0
    %1343 = vmatprep.subr.mxu0 0.0
    %1344 = vmatpush2.msra.mxu0 0.0
    %1345 = vmatprep.subr.mxu0 0.0
    %1346 = vmatpush2.msra.mxu0 0.0
    %1347 = vmatprep.subr.mxu0 0.0
    %1348 = vmatpush2.msra.mxu0 0.0
    %1349 = vmatprep.subr.mxu0 0.0
    %1350 = vmatpush2.msra.mxu0 0.0
    %1351 = vmatprep.subr.mxu0 0.0
    %1352 = vmatpush2.msra.mxu0 0.0
    %1353 = vmatprep.subr.mxu0 0.0
    %1354 = vmatpush2.msra.mxu0 0.0
    %1355 = vmatprep.subr.mxu0 0.0
    %1356 = vmatpush2.msra.mxu0 0.0
    %1357 = vmatprep.subr.mxu0 0.0
    %1358 = vmatpush2.msra.mxu0 0.0
    %1359 = vmatprep.subr.mxu0 0.0
    %1360 = vmatpush2.msra.mxu0 0.0
    %1361 = vmatprep.mubr.f32.mxu0 0.0
    %1362 = vmatmul.mubr.f32.gmra.mxu0 %v1292
    %v1363 = vpop.f32.mrf.mxu0
    %v1364 = vadd.f32 0.0, %v1363
    %v1365 = vpop.f32.mrf.mxu0
    %1366 = vmatprep.mubr.f32.mxu0 0.0
    %1367 = vmatmul.mubr.f32.gmra.mxu0 %v1295
    %v1368 = vpop.f32.mrf.mxu0
    %v1369 = vadd.f32 0.0, %v1368
    %v1370 = vpop.f32.mrf.mxu0
    %1371 = vdwg.mxu0
    %v1373 = vsel %vm350, %v1116, 0
    %v1376 = vsel %vm350, %v1121, 0
    %1378 = vmatprep.subr.mxu0 0.0
    %1379 = vmatpush1.msra.mxu0 0.0
    %1380 = vmatprep.subr.mxu0 0.0
    %1381 = vmatpush1.msra.mxu0 0.0
    %1382 = vmatprep.subr.mxu0 0.0
    %1383 = vmatpush1.msra.mxu0 0.0
    %1384 = vmatprep.subr.mxu0 0.0
    %1385 = vmatpush1.msra.mxu0 0.0
    %1386 = vmatprep.subr.mxu0 0.0
    %1387 = vmatpush1.msra.mxu0 0.0
    %1388 = vmatprep.subr.mxu0 0.0
    %1389 = vmatpush1.msra.mxu0 0.0
    %1390 = vmatprep.subr.mxu0 0.0
    %1391 = vmatpush1.msra.mxu0 0.0
    %1392 = vmatprep.subr.mxu0 0.0
    %1393 = vmatpush1.msra.mxu0 0.0
    %1394 = vmatprep.subr.mxu0 0.0
    %1395 = vmatpush1.msra.mxu0 0.0
    %1396 = vmatprep.subr.mxu0 0.0
    %1397 = vmatpush1.msra.mxu0 0.0
    %1398 = vmatprep.subr.mxu0 0.0
    %1399 = vmatpush1.msra.mxu0 0.0
    %1400 = vmatprep.subr.mxu0 0.0
    %1401 = vmatpush1.msra.mxu0 0.0
    %1402 = vmatprep.subr.mxu0 0.0
    %1403 = vmatpush1.msra.mxu0 0.0
    %1404 = vmatprep.subr.mxu0 0.0
    %1405 = vmatpush1.msra.mxu0 0.0
    %1406 = vmatprep.subr.mxu0 0.0
    %1407 = vmatpush1.msra.mxu0 0.0
    %1408 = vmatprep.subr.mxu0 0.0
    %1409 = vmatpush1.msra.mxu0 %v31
    %1410 = vmatprep.subr.mxu0 0.0
    %1411 = vmatpush2.msra.mxu0 0.0
    %1412 = vmatprep.subr.mxu0 0.0
    %1413 = vmatpush2.msra.mxu0 0.0
    %1414 = vmatprep.subr.mxu0 0.0
    %1415 = vmatpush2.msra.mxu0 0.0
    %1416 = vmatprep.subr.mxu0 0.0
    %1417 = vmatpush2.msra.mxu0 0.0
    %1418 = vmatprep.subr.mxu0 0.0
    %1419 = vmatpush2.msra.mxu0 0.0
    %1420 = vmatprep.subr.mxu0 0.0
    %1421 = vmatpush2.msra.mxu0 0.0
    %1422 = vmatprep.subr.mxu0 0.0
    %1423 = vmatpush2.msra.mxu0 0.0
    %1424 = vmatprep.subr.mxu0 0.0
    %1425 = vmatpush2.msra.mxu0 0.0
    %1426 = vmatprep.subr.mxu0 0.0
    %1427 = vmatpush2.msra.mxu0 0.0
    %1428 = vmatprep.subr.mxu0 0.0
    %1429 = vmatpush2.msra.mxu0 0.0
    %1430 = vmatprep.subr.mxu0 0.0
    %1431 = vmatpush2.msra.mxu0 0.0
    %1432 = vmatprep.subr.mxu0 0.0
    %1433 = vmatpush2.msra.mxu0 0.0
    %1434 = vmatprep.subr.mxu0 0.0
    %1435 = vmatpush2.msra.mxu0 0.0
    %1436 = vmatprep.subr.mxu0 0.0
    %1437 = vmatpush2.msra.mxu0 0.0
    %1438 = vmatprep.subr.mxu0 0.0
    %1439 = vmatpush2.msra.mxu0 0.0
    %1440 = vmatprep.subr.mxu0 0.0
    %1441 = vmatpush2.msra.mxu0 0.0
    %1442 = vmatprep.mubr.f32.mxu0 0.0
    %1443 = vmatmul.mubr.f32.gmra.mxu0 %v1373
    %v1444 = vpop.f32.mrf.mxu0
    %v1445 = vadd.f32 0.0, %v1444
    %v1446 = vpop.f32.mrf.mxu0
    %1447 = vmatprep.mubr.f32.mxu0 0.0
    %1448 = vmatmul.mubr.f32.gmra.mxu0 %v1376
    %v1449 = vpop.f32.mrf.mxu0
    %v1450 = vadd.f32 0.0, %v1449
    %v1451 = vpop.f32.mrf.mxu0
    %1452 = vdwg.mxu0
    %v1454 = vsel %vm350, %v1202, 0
    %v1457 = vsel %vm350, %v1207, 0
    %1459 = vmatprep.subr.mxu0 0.0
    %1460 = vmatpush1.msra.mxu0 0.0
    %1461 = vmatprep.subr.mxu0 0.0
    %1462 = vmatpush1.msra.mxu0 0.0
    %1463 = vmatprep.subr.mxu0 0.0
    %1464 = vmatpush1.msra.mxu0 0.0
    %1465 = vmatprep.subr.mxu0 0.0
    %1466 = vmatpush1.msra.mxu0 0.0
    %1467 = vmatprep.subr.mxu0 0.0
    %1468 = vmatpush1.msra.mxu0 0.0
    %1469 = vmatprep.subr.mxu0 0.0
    %1470 = vmatpush1.msra.mxu0 0.0
    %1471 = vmatprep.subr.mxu0 0.0
    %1472 = vmatpush1.msra.mxu0 0.0
    %1473 = vmatprep.subr.mxu0 0.0
    %1474 = vmatpush1.msra.mxu0 0.0
    %1475 = vmatprep.subr.mxu0 0.0
    %1476 = vmatpush1.msra.mxu0 0.0
    %1477 = vmatprep.subr.mxu0 0.0
    %1478 = vmatpush1.msra.mxu0 0.0
    %1479 = vmatprep.subr.mxu0 0.0
    %1480 = vmatpush1.msra.mxu0 0.0
    %1481 = vmatprep.subr.mxu0 0.0
    %1482 = vmatpush1.msra.mxu0 0.0
    %1483 = vmatprep.subr.mxu0 0.0
    %1484 = vmatpush1.msra.mxu0 0.0
    %1485 = vmatprep.subr.mxu0 0.0
    %1486 = vmatpush1.msra.mxu0 0.0
    %1487 = vmatprep.subr.mxu0 0.0
    %1488 = vmatpush1.msra.mxu0 0.0
    %1489 = vmatprep.subr.mxu0 0.0
    %1490 = vmatpush1.msra.mxu0 %v36
    %1491 = vmatprep.subr.mxu0 0.0
    %1492 = vmatpush2.msra.mxu0 0.0
    %1493 = vmatprep.subr.mxu0 0.0
    %1494 = vmatpush2.msra.mxu0 0.0
    %1495 = vmatprep.subr.mxu0 0.0
    %1496 = vmatpush2.msra.mxu0 0.0
    %1497 = vmatprep.subr.mxu0 0.0
    %1498 = vmatpush2.msra.mxu0 0.0
    %1499 = vmatprep.subr.mxu0 0.0
    %1500 = vmatpush2.msra.mxu0 0.0
    %1501 = vmatprep.subr.mxu0 0.0
    %1502 = vmatpush2.msra.mxu0 0.0
    %1503 = vmatprep.subr.mxu0 0.0
    %1504 = vmatpush2.msra.mxu0 0.0
    %1505 = vmatprep.subr.mxu0 0.0
    %1506 = vmatpush2.msra.mxu0 0.0
    %1507 = vmatprep.subr.mxu0 0.0
    %1508 = vmatpush2.msra.mxu0 0.0
    %1509 = vmatprep.subr.mxu0 0.0
    %1510 = vmatpush2.msra.mxu0 0.0
    %1511 = vmatprep.subr.mxu0 0.0
    %1512 = vmatpush2.msra.mxu0 0.0
    %1513 = vmatprep.subr.mxu0 0.0
    %1514 = vmatpush2.msra.mxu0 0.0
    %1515 = vmatprep.subr.mxu0 0.0
    %1516 = vmatpush2.msra.mxu0 0.0
    %1517 = vmatprep.subr.mxu0 0.0
    %1518 = vmatpush2.msra.mxu0 0.0
    %1519 = vmatprep.subr.mxu0 0.0
    %1520 = vmatpush2.msra.mxu0 0.0
    %1521 = vmatprep.subr.mxu0 0.0
    %1522 = vmatpush2.msra.mxu0 0.0
    %1523 = vmatprep.mubr.f32.mxu0 0.0
    %1524 = vmatmul.mubr.f32.gmra.mxu0 %v1454
    %v1525 = vpop.f32.mrf.mxu0
    %v1526 = vadd.f32 0.0, %v1525
    %v1527 = vpop.f32.mrf.mxu0
    %1528 = vmatprep.mubr.f32.mxu0 0.0
    %1529 = vmatmul.mubr.f32.gmra.mxu0 %v1457
    %v1530 = vpop.f32.mrf.mxu0
    %v1531 = vadd.f32 0.0, %v1530
    %v1532 = vpop.f32.mrf.mxu0
    %1533 = vdwg.mxu0
    %v1534 = vadd.f32 %v1283, %v1364
    %v1535 = vadd.f32 %v1288, %v1369
    %v1536 = vadd.f32 %v1534, %v1445
    %v1537 = vadd.f32 %v1535, %v1450
    %v1538 = vadd.f32 %v1536, %v1526
    %v1539 = vadd.f32 %v1537, %v1531
    %vm1540 = vcmask 259077
    %1541 = vst.msk [vmem:[#allocation2 - $0x5] sm:$0x20] %vm1540, %v1538
    %vm1542 = vcmask 261127
    %1543 = vst.msk [vmem:[#allocation2 - $0x6] sm:$0x80] %vm1542, %v1539
    // Predicated region
    $region10: #{tpu_custom_call.1} parent=1 // pred_check
      _
    $region11: #{tpu_custom_call.1} parent=1 // pred_check_branch
      %1545 = sbr.rel (0) target = $region13
    $region12: #{tpu_custom_call.1} parent=1 // pred_region
      %s1547 = ssub.s32 32, 32
      %1548 = vsyncadd [#allocation3], %s1547
      %s1550 = sshll.u32 [#allocation2], 4
      %s1551 = int_to_ptr.vmem [resolvable:$true] %s1550
      %1553 = dma.vmem_to_hbm [thread:$0]  %s1551, 32, %s2, [#allocation3]
    $region13: #{tpu_custom_call.1} parent=1 // pred_fallthru
      _
    // Predicated region
    $region14: #{tpu_custom_call.1} parent=1 // pred_check
      _
    $region15: #{tpu_custom_call.1} parent=1 // pred_check_branch
      %1555 = sbr.rel (0) target = $region17
    $region16: #{tpu_custom_call.1} parent=1 // pred_region
      %s1557 = ssub.s32 1024, 1024
      %1558 = vsyncadd [#allocation5], %s1557
      %s1559 = sshll.u32 [#allocation4], 4
      %s1560 = int_to_ptr.vmem [resolvable:$true] %s1559
      %1565 = dma.vmem_to_hbm [thread:$0]  %s1560, 1024, %s3, [#allocation5], 128, 128, 8
    $region17: #{tpu_custom_call.1} parent=1 // pred_fallthru
      _
    // Predicated region
    $region18: #{tpu_custom_call.1} parent=1 // pred_check
      _
    $region19: #{tpu_custom_call.1} parent=1 // pred_check_branch
      %1567 = sbr.rel (0) target = $region21
    $region20: #{tpu_custom_call.1} parent=1 // pred_region
      %1568 = dma.done [#allocation3], 32
    $region21: #{tpu_custom_call.1} parent=1 // pred_fallthru
      _
    // Predicated region
    $region22: #{tpu_custom_call.1} parent=1 // pred_check
      _
    $region23: #{tpu_custom_call.1} parent=1 // pred_check_branch
      %1570 = sbr.rel (0) target = $region25
    $region24: #{tpu_custom_call.1} parent=1 // pred_region
      %1571 = dma.done [#allocation5], 1024
    $region25: #{tpu_custom_call.1} parent=1 // pred_fallthru
      _
    %1572 = vsyncpa [#allocation3], 1
    %1573 = vsyncpa [#allocation5], 1

</llo_original>
